<compile_context>
chip_gen: v5e
topology: v5e:2x2
jax: 0.10.0
libtpu: 0.0.40
codegen_flags: <defaults>
</compile_context>

<pallas_src>
import jax
import jax.numpy as jnp
from jax.experimental import pallas as pl
from jax.experimental.pallas import tpu as pltpu


def _round_up(x: int, m: int) -> int:
    return (x + m - 1) // m * m


def _chip_flags():
    """Returns (bf16_valu, num_tensorcores, vmem_capacity_bytes), conservatively."""
    bf16_valu = True
    num_tc = 1
    vmem_cap = 64 * 1024 * 1024  # conservative default (v7x per-TC VMEM)
    try:
        kind = jax.devices()[0].device_kind.lower()
    except Exception:
        kind = ""
    # v5e/v5p and older have no bf16 VALU: keep activations in f32 there.
    if any(t in kind for t in ("v2", "v3", "v4", "v5")):
        bf16_valu = False
    if "v7" in kind:
        num_tc = 2
    try:
        vmem_cap = int(pltpu.get_tpu_info().vmem_capacity_bytes)
    except Exception:
        pass
    return bf16_valu, num_tc, vmem_cap


def _make_generator_kernel(bf16_act: bool):
    def kernel(z_ref, w1_ref, b1_ref, w2_ref, b2_ref, o_ref):
        # --- Linear 1 on the MXU: bf16 operands, f32 accumulation ---
        z = z_ref[...].astype(jnp.bfloat16)
        h = jnp.dot(z, w1_ref[...], preferred_element_type=jnp.float32)
        h = h + b1_ref[...]                 # (1, H) broadcasts over batch tile

        # --- LeakyReLU (PyTorch default slope 0.01) as a single vmax ---
        if bf16_act:
            # bf16 VALU path (v6e/v7x): halve vreg pressure; the bf16 cast
            # needed by the second matmul happens once, here.
            h = h.astype(jnp.bfloat16)
            h = jnp.maximum(h, 0.01 * h)
        else:
            h = jnp.maximum(h, 0.01 * h)
            h = h.astype(jnp.bfloat16)

        # --- Linear 2 on the MXU ---
        logits = jnp.dot(h, w2_ref[...], preferred_element_type=jnp.float32)
        logits = logits + b2_ref[...]

        # --- Numerically stable softmax over the lane (last) dim ---
        m = jnp.max(logits, axis=-1, keepdims=True)
        e = jnp.exp(logits - m)
        s = jnp.sum(e, axis=-1, keepdims=True)
        # Exact divide so output rows sum to 1 (epilogue is not the bottleneck).
        o_ref[...] = (e / s).astype(o_ref.dtype)

    return kernel


def generator_forward(z, w1, b1, w2, b2, *, tb=None, out_dtype=jnp.float32,
                      bf16_act=None):
    """z: (B, z_dim); w1: (z_dim, H) bf16; b1: (1, H) f32; w2: (H, H) bf16;
    b2: (1, H) f32. Returns (B, H) softmax probs in `out_dtype`."""
    B, z_dim = z.shape
    H = w1.shape[1]
    assert w1.shape == (z_dim, H) and w2.shape == (H, H)
    assert b1.shape == (1, H) and b2.shape == (1, H)

    bf16_valu, num_tc, vmem_cap = _chip_flags()
    if bf16_act is None:
        bf16_act = bf16_valu

    out_itemsize = jnp.dtype(out_dtype).itemsize
    z_itemsize = jnp.dtype(z.dtype).itemsize

    # Batch tile: as large as reasonable (kernel is writeback/overhead bound),
    # but keep >= 2 grid steps on 2-TC chips so the "parallel" axis shards.
    if tb is None:
        tb = min(1024, _round_up(B, 8))
        if num_tc >= 2 and B > 8:
            tb = min(tb, max(8, _round_up(-(-B // num_tc), 8)))

    # VMEM fit: resident bf16 weights (budget 2x for pipelining buffers) +
    # double-buffered z / out tiles, against ~75% of this chip's capacity.
    weight_bytes = 2 * (w1.nbytes + b1.nbytes + w2.nbytes + b2.nbytes)
    budget = int(0.75 * vmem_cap)
    if weight_bytes > budget:
        # TODO(synk): for very large H (w2 no longer VMEM-resident, esp. on
        # v7x's 64 MiB), tile w2 over an output-N grid axis + two-pass softmax.
        raise NotImplementedError(
            "weights do not fit in VMEM; output-N tiled path not implemented")

    def _io_bytes(t):
        return 2 * t * (z_dim * z_itemsize + H * out_itemsize)

    while weight_bytes + _io_bytes(tb) > budget and tb > 8:
        tb = max(8, _round_up(tb // 2, 8))

    Bp = _round_up(B, tb)
    if Bp != B:
        # Padded rows are valid (softmax of bias-only logits), dropped at the end.
        z = jnp.pad(z, ((0, Bp - B), (0, 0)))
    grid = (Bp // tb,)

    vmem_limit = min(vmem_cap,
                     max(int(1.25 * (weight_bytes + _io_bytes(tb))),
                         8 * 1024 * 1024))

    out = pl.pallas_call(
        _make_generator_kernel(bf16_act),
        out_shape=jax.ShapeDtypeStruct((Bp, H), out_dtype),
        grid_spec=pltpu.PrefetchScalarGridSpec(
            num_scalar_prefetch=0,
            grid=grid,
            in_specs=[
                pl.BlockSpec((tb, z_dim), lambda i: (i, 0)),   # z: tiled over batch
                pl.BlockSpec((z_dim, H), lambda i: (0, 0)),    # w1: VMEM-resident
                pl.BlockSpec((1, H), lambda i: (0, 0)),        # b1: VMEM-resident
                pl.BlockSpec((H, H), lambda i: (0, 0)),        # w2: VMEM-resident
                pl.BlockSpec((1, H), lambda i: (0, 0)),        # b2: VMEM-resident
            ],
            out_specs=pl.BlockSpec((tb, H), lambda i: (i, 0)),
        ),
        compiler_params=pltpu.CompilerParams(
            dimension_semantics=("parallel",),    # megacore / 2-TC batch sharding
            vmem_limit_bytes=vmem_limit,
        ),
    )(z, w1, b1, w2, b2)

    return out[:B]


def init_generator_params(key, z_dim, data_dim):
    """Mimics nn.Linear's U(-1/sqrt(fan_in), 1/sqrt(fan_in)); weights stored
    pre-transposed as (in, out) and cast to bf16, biases kept in f32."""
    H = 2 ** data_dim
    k1, k2, k3, k4 = jax.random.split(key, 4)
    lim1 = 1.0 / jnp.sqrt(z_dim)
    lim2 = 1.0 / jnp.sqrt(H)
    w1 = jax.random.uniform(k1, (z_dim, H), jnp.float32, -lim1, lim1).astype(jnp.bfloat16)
    b1 = jax.random.uniform(k2, (1, H), jnp.float32, -lim1, lim1)
    w2 = jax.random.uniform(k3, (H, H), jnp.float32, -lim2, lim2).astype(jnp.bfloat16)
    b2 = jax.random.uniform(k4, (1, H), jnp.float32, -lim2, lim2)
    return w1, b1, w2, b2


if __name__ == "__main__":
    # B=512 exercises a full batch tile; data_dim=7 -> H=128 (lane-dense output).
    B, Z_DIM, DATA_DIM = 512, 16, 7
    H = 2 ** DATA_DIM

    key = jax.random.PRNGKey(0)
    kz, kp = jax.random.split(key)
    z = jax.random.normal(kz, (B, Z_DIM), jnp.float32)
    w1, b1, w2, b2 = init_generator_params(kp, Z_DIM, DATA_DIM)

    bf16_act, _, _ = _chip_flags()

    # Pure-JAX reference using the same bf16-weight / f32-accumulate recipe.
    def ref_fwd(zz):
        h = jnp.dot(zz.astype(jnp.bfloat16), w1,
                    preferred_element_type=jnp.float32) + b1
        if bf16_act:
            hb = h.astype(jnp.bfloat16)
            hb = jnp.maximum(hb, 0.01 * hb)
        else:
            h = jnp.maximum(h, 0.01 * h)
            hb = h.astype(jnp.bfloat16)
        logits = jnp.dot(hb, w2, preferred_element_type=jnp.float32) + b2
        return jax.nn.softmax(logits, axis=-1)

    ref = ref_fwd(z)

    # 1) Default f32 output, single/double grid step depending on chip.
    out = jax.block_until_ready(generator_forward(z, w1, b1, w2, b2))
    assert out.shape == (B, H) and out.dtype == jnp.float32
    assert jnp.allclose(out, ref, atol=5e-4, rtol=2e-3)
    assert jnp.allclose(jnp.sum(out, axis=-1), jnp.ones((B,)), atol=1e-4)

    # 2) Multi-step grid path (tb=128 -> 4 grid steps).
    out_tiled = jax.block_until_ready(generator_forward(z, w1, b1, w2, b2, tb=128))
    assert jnp.allclose(out_tiled, ref, atol=5e-4, rtol=2e-3)

    # 3) Ragged batch (exercises padding) + bf16 output (halved HBM writeback).
    out_pad = jax.block_until_ready(generator_forward(z[:500], w1, b1, w2, b2))
    assert out_pad.shape == (500, H)
    assert jnp.allclose(out_pad, ref[:500], atol=5e-4, rtol=2e-3)

    out_bf16 = jax.block_until_ready(
        generator_forward(z, w1, b1, w2, b2, out_dtype=jnp.bfloat16))
    assert out_bf16.dtype == jnp.bfloat16
    assert jnp.allclose(out_bf16.astype(jnp.float32), ref, atol=1e-2, rtol=5e-2)

    print("KERNEL_OK")
</pallas_src>

<mosaic_0001>
module attributes {stable_mosaic.version = 11 : i64} {
  func.func @kernel(%arg0: i32, %arg1: memref<512x16xf32, #tpu.memory_space<vmem>>, %arg2: memref<16x128xbf16, #tpu.memory_space<vmem>>, %arg3: memref<1x128xf32, #tpu.memory_space<vmem>>, %arg4: memref<128x128xbf16, #tpu.memory_space<vmem>>, %arg5: memref<1x128xf32, #tpu.memory_space<vmem>>, %arg6: memref<512x128xf32, #tpu.memory_space<vmem>>) attributes {dimension_semantics = [#tpu.dimension_semantics<parallel>], iteration_bounds = array<i64: 1>, scalar_prefetch = 0 : i64, scratch_operands = 0 : i64, tpu.core_type = #tpu.core_type<tc>, window_params = [{transform_indices = @transform_0, window_bounds = array<i64: 512, 16>}, {pipeline_mode = #tpu.pipeline_mode<synchronous>, transform_indices = @transform_1, window_bounds = array<i64: 16, 128>}, {pipeline_mode = #tpu.pipeline_mode<synchronous>, transform_indices = @transform_2, window_bounds = array<i64: 1, 128>}, {pipeline_mode = #tpu.pipeline_mode<synchronous>, transform_indices = @transform_3, window_bounds = array<i64: 128, 128>}, {pipeline_mode = #tpu.pipeline_mode<synchronous>, transform_indices = @transform_4, window_bounds = array<i64: 1, 128>}, {transform_indices = @transform_5, window_bounds = array<i64: 512, 128>}]} {
    %c0 = arith.constant 0 : index
    %c0_0 = arith.constant 0 : index
    %0 = vector.load %arg1[%c0, %c0_0] : memref<512x16xf32, #tpu.memory_space<vmem>>, vector<512x16xf32>
    %1 = arith.truncf %0 : vector<512x16xf32> to vector<512x16xbf16>
    %c0_1 = arith.constant 0 : index
    %c0_2 = arith.constant 0 : index
    %2 = vector.load %arg2[%c0_1, %c0_2] : memref<16x128xbf16, #tpu.memory_space<vmem>>, vector<16x128xbf16>
    %cst = arith.constant dense<0.000000e+00> : vector<512x128xf32>
    %3 = tpu.matmul %1, %2, %cst {dimension_numbers = #tpu.dot_dimension_numbers<[1], [0], [0], [1], [0, 0, 1, 1], [], []>} : vector<512x16xbf16>, vector<16x128xbf16>, vector<512x128xf32> -> vector<512x128xf32>
    %c0_3 = arith.constant 0 : index
    %c0_4 = arith.constant 0 : index
    %4 = vector.load %arg3[%c0_3, %c0_4] : memref<1x128xf32, #tpu.memory_space<vmem>>, vector<1x128xf32>
    %5 = vector.broadcast %4 : vector<1x128xf32> to vector<512x128xf32>
    %6 = arith.addf %3, %5 : vector<512x128xf32>
    %7 = arith.truncf %6 : vector<512x128xf32> to vector<512x128xbf16>
    %cst_5 = arith.constant 1.000980e-02 : bf16
    %8 = vector.broadcast %cst_5 : bf16 to vector<512x128xbf16>
    %9 = arith.mulf %8, %7 : vector<512x128xbf16>
    %10 = arith.maximumf %7, %9 : vector<512x128xbf16>
    %c0_6 = arith.constant 0 : index
    %c0_7 = arith.constant 0 : index
    %11 = vector.load %arg4[%c0_6, %c0_7] : memref<128x128xbf16, #tpu.memory_space<vmem>>, vector<128x128xbf16>
    %cst_8 = arith.constant dense<0.000000e+00> : vector<512x128xf32>
    %12 = tpu.matmul %10, %11, %cst_8 {dimension_numbers = #tpu.dot_dimension_numbers<[1], [0], [0], [1], [0, 0, 1, 1], [], []>} : vector<512x128xbf16>, vector<128x128xbf16>, vector<512x128xf32> -> vector<512x128xf32>
    %c0_9 = arith.constant 0 : index
    %c0_10 = arith.constant 0 : index
    %13 = vector.load %arg5[%c0_9, %c0_10] : memref<1x128xf32, #tpu.memory_space<vmem>>, vector<1x128xf32>
    %14 = vector.broadcast %13 : vector<1x128xf32> to vector<512x128xf32>
    %15 = arith.addf %12, %14 : vector<512x128xf32>
    %cst_11 = arith.constant dense<0xFF800000> : vector<512xf32>
    %16 = vector.multi_reduction <maximumf>, %15, %cst_11 [1] : vector<512x128xf32> to vector<512xf32>
    %17 = vector.shape_cast %16 : vector<512xf32> to vector<512x1xf32>
    %18 = vector.broadcast %17 : vector<512x1xf32> to vector<512x128xf32>
    %19 = arith.subf %15, %18 : vector<512x128xf32>
    %20 = math.exp %19 : vector<512x128xf32>
    %cst_12 = arith.constant dense<0.000000e+00> : vector<512xf32>
    %21 = vector.multi_reduction <add>, %20, %cst_12 [1] : vector<512x128xf32> to vector<512xf32>
    %22 = vector.shape_cast %21 : vector<512xf32> to vector<512x1xf32>
    %23 = vector.broadcast %22 : vector<512x1xf32> to vector<512x128xf32>
    %24 = arith.divf %20, %23 : vector<512x128xf32>
    %c0_13 = arith.constant 0 : index
    %c0_14 = arith.constant 0 : index
    %25 = vector.load %arg6[%c0_13, %c0_14] : memref<512x128xf32, #tpu.memory_space<vmem>>, vector<512x128xf32>
    tpu.vector_store %arg6[%c0_13, %c0_14], %24 {strides = array<i32>} : memref<512x128xf32, #tpu.memory_space<vmem>>, vector<512x128xf32>,
    return
  }
  func.func @transform_0(%arg0: i32) -> (i32, i32) {
    %c0_i32 = arith.constant 0 : i32
    %c0_i32_0 = arith.constant 0 : i32
    return %arg0, %c0_i32 : i32, i32
  }
  func.func @transform_1(%arg0: i32) -> (i32, i32) {
    %c0_i32 = arith.constant 0 : i32
    %c0_i32_0 = arith.constant 0 : i32
    %c0_i32_1 = arith.constant 0 : i32
    return %c0_i32, %c0_i32_0 : i32, i32
  }
  func.func @transform_2(%arg0: i32) -> (i32, i32) {
    %c0_i32 = arith.constant 0 : i32
    %c0_i32_0 = arith.constant 0 : i32
    %c0_i32_1 = arith.constant 0 : i32
    return %c0_i32, %c0_i32_0 : i32, i32
  }
  func.func @transform_3(%arg0: i32) -> (i32, i32) {
    %c0_i32 = arith.constant 0 : i32
    %c0_i32_0 = arith.constant 0 : i32
    %c0_i32_1 = arith.constant 0 : i32
    return %c0_i32, %c0_i32_0 : i32, i32
  }
  func.func @transform_4(%arg0: i32) -> (i32, i32) {
    %c0_i32 = arith.constant 0 : i32
    %c0_i32_0 = arith.constant 0 : i32
    %c0_i32_1 = arith.constant 0 : i32
    return %c0_i32, %c0_i32_0 : i32, i32
  }
  func.func @transform_5(%arg0: i32) -> (i32, i32) {
    %c0_i32 = arith.constant 0 : i32
    %c0_i32_0 = arith.constant 0 : i32
    return %arg0, %c0_i32 : i32, i32
  }
}

</mosaic_0001>

<llo_original>
// kernel: tpu_custom_call.1
$region0: #{tpu_custom_call.1}
  #allocation0 [shape = 'u32[]', space=smem, size = 0x4, offset = 0x4, fixed_abs, tag = 'smem constant byte address 0x4 - core index']
  #allocation1 [shape = 'u32[72,128]{1,0:T(1,128)}', space=vmem, size = 0x9000, scoped, tag = 'internal scratch']
  %s0 = inlined_call_operand.vmem [shape: f32[512,16], index: 0, kind: input, shape index: {}]
  %s1 = inlined_call_operand.vmem [shape: bf16[16,128], index: 1, kind: input, shape index: {}]
  %s2 = inlined_call_operand.vmem [shape: f32[1,128], index: 2, kind: input, shape index: {}]
  %s3 = inlined_call_operand.vmem [shape: bf16[128,128], index: 3, kind: input, shape index: {}]
  %s4 = inlined_call_operand.vmem [shape: f32[1,128], index: 4, kind: input, shape index: {}]
  %s5 = inlined_call_operand.hbm [shape: f32[512,128], index: 5, kind: output, shape index: {}]
  %s6 = sld [smem:[#allocation0]]
  $region30: #{tpu_custom_call.1} parent=0
    _
  %s8 = ssub.s32 1, %s6
  %s9 = scalar_select 0, %s8, %s6
  $region1: #{tpu_custom_call.1} parent=0
    #allocation2 [shape = 'u8[262144]{0}', space=vmem, size = 0x40000, scoped, tag = 'output window, operand 0, single buffered']
    #allocation3 [shape = 's32[1]{0}', space=sflag, size = 0x4, scoped, tag = 'scoped memory for tpu_custom_call.1']
    %10 = vsyncpa [#allocation3], 0
    // Predicated region
    $region2: #{tpu_custom_call.1} parent=1 // pred_check
      _
    $region3: #{tpu_custom_call.1} parent=1 // pred_check_branch
      %12 = sbr.rel (0) target = $region5
    $region4: #{tpu_custom_call.1} parent=1 // pred_region
      _
    $region5: #{tpu_custom_call.1} parent=1 // pred_fallthru
      _
    // Predicated region
    $region6: #{tpu_custom_call.1} parent=1 // pred_check
      _
    $region7: #{tpu_custom_call.1} parent=1 // pred_check_branch
      %14 = sbr.rel (0) target = $region9
    $region8: #{tpu_custom_call.1} parent=1 // pred_region
      _
    $region9: #{tpu_custom_call.1} parent=1 // pred_fallthru
      _
    // Predicated region
    $region10: #{tpu_custom_call.1} parent=1 // pred_check
      _
    $region11: #{tpu_custom_call.1} parent=1 // pred_check_branch
      %16 = sbr.rel (0) target = $region13
    $region12: #{tpu_custom_call.1} parent=1 // pred_region
      _
    $region13: #{tpu_custom_call.1} parent=1 // pred_fallthru
      _
    // Predicated region
    $region14: #{tpu_custom_call.1} parent=1 // pred_check
      _
    $region15: #{tpu_custom_call.1} parent=1 // pred_check_branch
      %18 = sbr.rel (0) target = $region17
    $region16: #{tpu_custom_call.1} parent=1 // pred_region
      _
    $region17: #{tpu_custom_call.1} parent=1 // pred_fallthru
      _
    // Predicated region
    $region18: #{tpu_custom_call.1} parent=1 // pred_check
      _
    $region19: #{tpu_custom_call.1} parent=1 // pred_check_branch
      %20 = sbr.rel (0) target = $region21
    $region20: #{tpu_custom_call.1} parent=1 // pred_region
      _
    $region21: #{tpu_custom_call.1} parent=1 // pred_fallthru
      _
    %v22 = vld [vmem:[%s0] sm:$0xff]
    %v23 = vld [vmem:[%s0 + $0x8] sm:$0xff]
    %v24 = vld [vmem:[%s0 + $0x10] sm:$0xff]
    %v25 = vld [vmem:[%s0 + $0x18] sm:$0xff]
    %v26 = vld [vmem:[%s0 + $0x20] sm:$0xff]
    %v27 = vld [vmem:[%s0 + $0x28] sm:$0xff]
    %v28 = vld [vmem:[%s0 + $0x30] sm:$0xff]
    %v29 = vld [vmem:[%s0 + $0x38] sm:$0xff]
    %v30 = vld [vmem:[%s0 + $0x40] sm:$0xff]
    %v31 = vld [vmem:[%s0 + $0x48] sm:$0xff]
    %v32 = vld [vmem:[%s0 + $0x50] sm:$0xff]
    %v33 = vld [vmem:[%s0 + $0x58] sm:$0xff]
    %v34 = vld [vmem:[%s0 + $0x60] sm:$0xff]
    %v35 = vld [vmem:[%s0 + $0x68] sm:$0xff]
    %v36 = vld [vmem:[%s0 + $0x70] sm:$0xff]
    %v37 = vld [vmem:[%s0 + $0x78] sm:$0xff]
    %v38 = vld [vmem:[%s0 + $0x80] sm:$0xff]
    %v39 = vld [vmem:[%s0 + $0x88] sm:$0xff]
    %v40 = vld [vmem:[%s0 + $0x90] sm:$0xff]
    %v41 = vld [vmem:[%s0 + $0x98] sm:$0xff]
    %v42 = vld [vmem:[%s0 + $0xa0] sm:$0xff]
    %v43 = vld [vmem:[%s0 + $0xa8] sm:$0xff]
    %v44 = vld [vmem:[%s0 + $0xb0] sm:$0xff]
    %v45 = vld [vmem:[%s0 + $0xb8] sm:$0xff]
    %v46 = vld [vmem:[%s0 + $0xc0] sm:$0xff]
    %v47 = vld [vmem:[%s0 + $0xc8] sm:$0xff]
    %v48 = vld [vmem:[%s0 + $0xd0] sm:$0xff]
    %v49 = vld [vmem:[%s0 + $0xd8] sm:$0xff]
    %v50 = vld [vmem:[%s0 + $0xe0] sm:$0xff]
    %v51 = vld [vmem:[%s0 + $0xe8] sm:$0xff]
    %v52 = vld [vmem:[%s0 + $0xf0] sm:$0xff]
    %v53 = vld [vmem:[%s0 + $0xf8] sm:$0xff]
    %v54 = vld [vmem:[%s0 + $0x100] sm:$0xff]
    %v55 = vld [vmem:[%s0 + $0x108] sm:$0xff]
    %v56 = vld [vmem:[%s0 + $0x110] sm:$0xff]
    %v57 = vld [vmem:[%s0 + $0x118] sm:$0xff]
    %v58 = vld [vmem:[%s0 + $0x120] sm:$0xff]
    %v59 = vld [vmem:[%s0 + $0x128] sm:$0xff]
    %v60 = vld [vmem:[%s0 + $0x130] sm:$0xff]
    %v61 = vld [vmem:[%s0 + $0x138] sm:$0xff]
    %v62 = vld [vmem:[%s0 + $0x140] sm:$0xff]
    %v63 = vld [vmem:[%s0 + $0x148] sm:$0xff]
    %v64 = vld [vmem:[%s0 + $0x150] sm:$0xff]
    %v65 = vld [vmem:[%s0 + $0x158] sm:$0xff]
    %v66 = vld [vmem:[%s0 + $0x160] sm:$0xff]
    %v67 = vld [vmem:[%s0 + $0x168] sm:$0xff]
    %v68 = vld [vmem:[%s0 + $0x170] sm:$0xff]
    %v69 = vld [vmem:[%s0 + $0x178] sm:$0xff]
    %v70 = vld [vmem:[%s0 + $0x180] sm:$0xff]
    %v71 = vld [vmem:[%s0 + $0x188] sm:$0xff]
    %v72 = vld [vmem:[%s0 + $0x190] sm:$0xff]
    %v73 = vld [vmem:[%s0 + $0x198] sm:$0xff]
    %v74 = vld [vmem:[%s0 + $0x1a0] sm:$0xff]
    %v75 = vld [vmem:[%s0 + $0x1a8] sm:$0xff]
    %v76 = vld [vmem:[%s0 + $0x1b0] sm:$0xff]
    %v77 = vld [vmem:[%s0 + $0x1b8] sm:$0xff]
    %v78 = vld [vmem:[%s0 + $0x1c0] sm:$0xff]
    %v79 = vld [vmem:[%s0 + $0x1c8] sm:$0xff]
    %v80 = vld [vmem:[%s0 + $0x1d0] sm:$0xff]
    %v81 = vld [vmem:[%s0 + $0x1d8] sm:$0xff]
    %v82 = vld [vmem:[%s0 + $0x1e0] sm:$0xff]
    %v83 = vld [vmem:[%s0 + $0x1e8] sm:$0xff]
    %v84 = vld [vmem:[%s0 + $0x1f0] sm:$0xff]
    %v85 = vld [vmem:[%s0 + $0x1f8] sm:$0xff]
    %v86 = vpack.c.bf16 %v23, %v22
    %v87 = vpack.c.bf16 %v25, %v24
    %v88 = vpack.c.bf16 %v27, %v26
    %v89 = vpack.c.bf16 %v29, %v28
    %v90 = vpack.c.bf16 %v31, %v30
    %v91 = vpack.c.bf16 %v33, %v32
    %v92 = vpack.c.bf16 %v35, %v34
    %v93 = vpack.c.bf16 %v37, %v36
    %v94 = vpack.c.bf16 %v39, %v38
    %v95 = vpack.c.bf16 %v41, %v40
    %v96 = vpack.c.bf16 %v43, %v42
    %v97 = vpack.c.bf16 %v45, %v44
    %v98 = vpack.c.bf16 %v47, %v46
    %v99 = vpack.c.bf16 %v49, %v48
    %v100 = vpack.c.bf16 %v51, %v50
    %v101 = vpack.c.bf16 %v53, %v52
    %v102 = vpack.c.bf16 %v55, %v54
    %v103 = vpack.c.bf16 %v57, %v56
    %v104 = vpack.c.bf16 %v59, %v58
    %v105 = vpack.c.bf16 %v61, %v60
    %v106 = vpack.c.bf16 %v63, %v62
    %v107 = vpack.c.bf16 %v65, %v64
    %v108 = vpack.c.bf16 %v67, %v66
    %v109 = vpack.c.bf16 %v69, %v68
    %v110 = vpack.c.bf16 %v71, %v70
    %v111 = vpack.c.bf16 %v73, %v72
    %v112 = vpack.c.bf16 %v75, %v74
    %v113 = vpack.c.bf16 %v77, %v76
    %v114 = vpack.c.bf16 %v79, %v78
    %v115 = vpack.c.bf16 %v81, %v80
    %v116 = vpack.c.bf16 %v83, %v82
    %v117 = vpack.c.bf16 %v85, %v84
    %v118 = vld [vmem:[%s1] sm:$0xf]
    %v119 = vld [vmem:[%s1 + $0x4] sm:$0xf]
    %v120 = vld [vmem:[%s2] sm:$0x1]
    %v122 = vperm.slane %v120, 0
    %v126 = vunpack.c.l.b16 %v118
    %v127 = vunpack.c.l.b16 %v119
    %v128 = vpack.c.b16 %v127, %v126
    %vm130 = vcmask 130048
    %v132 = vsel %vm130, %v86, 0
    %v135 = vsel %vm130, %v87, 0
    %v138 = vsel %vm130, %v88, 0
    %v141 = vsel %vm130, %v89, 0
    %v144 = vsel %vm130, %v90, 0
    %v147 = vsel %vm130, %v91, 0
    %v150 = vsel %vm130, %v92, 0
    %v153 = vsel %vm130, %v93, 0
    %v156 = vsel %vm130, %v94, 0
    %v159 = vsel %vm130, %v95, 0
    %v162 = vsel %vm130, %v96, 0
    %v165 = vsel %vm130, %v97, 0
    %v168 = vsel %vm130, %v98, 0
    %v171 = vsel %vm130, %v99, 0
    %v174 = vsel %vm130, %v100, 0
    %v177 = vsel %vm130, %v101, 0
    %v180 = vsel %vm130, %v102, 0
    %v183 = vsel %vm130, %v103, 0
    %v186 = vsel %vm130, %v104, 0
    %v189 = vsel %vm130, %v105, 0
    %v192 = vsel %vm130, %v106, 0
    %v195 = vsel %vm130, %v107, 0
    %v198 = vsel %vm130, %v108, 0
    %v201 = vsel %vm130, %v109, 0
    %v204 = vsel %vm130, %v110, 0
    %v207 = vsel %vm130, %v111, 0
    %v210 = vsel %vm130, %v112, 0
    %v213 = vsel %vm130, %v113, 0
    %v216 = vsel %vm130, %v114, 0
    %v219 = vsel %vm130, %v115, 0
    %v222 = vsel %vm130, %v116, 0
    %v225 = vsel %vm130, %v117, 0
    %227 = vmatpush.bf16.msra.mxu0 0
    %228 = vmatpush.bf16.msra.mxu0 0
    %229 = vmatpush.bf16.msra.mxu0 0
    %230 = vmatpush.bf16.msra.mxu0 0
    %231 = vmatpush.bf16.msra.mxu0 0
    %232 = vmatpush.bf16.msra.mxu0 0
    %233 = vmatpush.bf16.msra.mxu0 0
    %234 = vmatpush.bf16.msra.mxu0 %v128
    %235 = vmatmul.bf16.gmra.mxu0 %v132
    %v236 = vpop.f32.mrf.mxu0
    %v237 = vadd.f32 %v122, %v236
    %v238 = vpop.f32.mrf.mxu0
    %v239 = vadd.f32 %v122, %v238
    %240 = vmatmul.bf16.gmra.mxu0 %v135
    %v241 = vpop.f32.mrf.mxu0
    %v242 = vadd.f32 %v122, %v241
    %v243 = vpop.f32.mrf.mxu0
    %v244 = vadd.f32 %v122, %v243
    %245 = vmatmul.bf16.gmra.mxu0 %v138
    %v246 = vpop.f32.mrf.mxu0
    %v247 = vadd.f32 %v122, %v246
    %v248 = vpop.f32.mrf.mxu0
    %v249 = vadd.f32 %v122, %v248
    %250 = vmatmul.bf16.gmra.mxu0 %v141
    %v251 = vpop.f32.mrf.mxu0
    %v252 = vadd.f32 %v122, %v251
    %v253 = vpop.f32.mrf.mxu0
    %v254 = vadd.f32 %v122, %v253
    %255 = vmatmul.bf16.gmra.mxu0 %v144
    %v256 = vpop.f32.mrf.mxu0
    %v257 = vadd.f32 %v122, %v256
    %v258 = vpop.f32.mrf.mxu0
    %v259 = vadd.f32 %v122, %v258
    %260 = vmatmul.bf16.gmra.mxu0 %v147
    %v261 = vpop.f32.mrf.mxu0
    %v262 = vadd.f32 %v122, %v261
    %v263 = vpop.f32.mrf.mxu0
    %v264 = vadd.f32 %v122, %v263
    %265 = vmatmul.bf16.gmra.mxu0 %v150
    %v266 = vpop.f32.mrf.mxu0
    %v267 = vadd.f32 %v122, %v266
    %v268 = vpop.f32.mrf.mxu0
    %v269 = vadd.f32 %v122, %v268
    %270 = vmatmul.bf16.gmra.mxu0 %v153
    %v271 = vpop.f32.mrf.mxu0
    %v272 = vadd.f32 %v122, %v271
    %v273 = vpop.f32.mrf.mxu0
    %v274 = vadd.f32 %v122, %v273
    %275 = vmatmul.bf16.gmra.mxu0 %v156
    %v276 = vpop.f32.mrf.mxu0
    %v277 = vadd.f32 %v122, %v276
    %v278 = vpop.f32.mrf.mxu0
    %v279 = vadd.f32 %v122, %v278
    %280 = vmatmul.bf16.gmra.mxu0 %v159
    %v281 = vpop.f32.mrf.mxu0
    %v282 = vadd.f32 %v122, %v281
    %v283 = vpop.f32.mrf.mxu0
    %v284 = vadd.f32 %v122, %v283
    %285 = vmatmul.bf16.gmra.mxu0 %v162
    %v286 = vpop.f32.mrf.mxu0
    %v287 = vadd.f32 %v122, %v286
    %v288 = vpop.f32.mrf.mxu0
    %v289 = vadd.f32 %v122, %v288
    %290 = vmatmul.bf16.gmra.mxu0 %v165
    %v291 = vpop.f32.mrf.mxu0
    %v292 = vadd.f32 %v122, %v291
    %v293 = vpop.f32.mrf.mxu0
    %v294 = vadd.f32 %v122, %v293
    %295 = vmatmul.bf16.gmra.mxu0 %v168
    %v296 = vpop.f32.mrf.mxu0
    %v297 = vadd.f32 %v122, %v296
    %v298 = vpop.f32.mrf.mxu0
    %v299 = vadd.f32 %v122, %v298
    %300 = vmatmul.bf16.gmra.mxu0 %v171
    %v301 = vpop.f32.mrf.mxu0
    %v302 = vadd.f32 %v122, %v301
    %v303 = vpop.f32.mrf.mxu0
    %v304 = vadd.f32 %v122, %v303
    %305 = vmatmul.bf16.gmra.mxu0 %v174
    %v306 = vpop.f32.mrf.mxu0
    %v307 = vadd.f32 %v122, %v306
    %v308 = vpop.f32.mrf.mxu0
    %v309 = vadd.f32 %v122, %v308
    %310 = vmatmul.bf16.gmra.mxu0 %v177
    %v311 = vpop.f32.mrf.mxu0
    %v312 = vadd.f32 %v122, %v311
    %v313 = vpop.f32.mrf.mxu0
    %v314 = vadd.f32 %v122, %v313
    %315 = vmatmul.bf16.gmra.mxu0 %v180
    %v316 = vpop.f32.mrf.mxu0
    %v317 = vadd.f32 %v122, %v316
    %v318 = vpop.f32.mrf.mxu0
    %v319 = vadd.f32 %v122, %v318
    %320 = vmatmul.bf16.gmra.mxu0 %v183
    %v321 = vpop.f32.mrf.mxu0
    %v322 = vadd.f32 %v122, %v321
    %v323 = vpop.f32.mrf.mxu0
    %v324 = vadd.f32 %v122, %v323
    %325 = vmatmul.bf16.gmra.mxu0 %v186
    %v326 = vpop.f32.mrf.mxu0
    %v327 = vadd.f32 %v122, %v326
    %v328 = vpop.f32.mrf.mxu0
    %v329 = vadd.f32 %v122, %v328
    %330 = vmatmul.bf16.gmra.mxu0 %v189
    %v331 = vpop.f32.mrf.mxu0
    %v332 = vadd.f32 %v122, %v331
    %v333 = vpop.f32.mrf.mxu0
    %v334 = vadd.f32 %v122, %v333
    %335 = vmatmul.bf16.gmra.mxu0 %v192
    %v336 = vpop.f32.mrf.mxu0
    %v337 = vadd.f32 %v122, %v336
    %v338 = vpop.f32.mrf.mxu0
    %v339 = vadd.f32 %v122, %v338
    %340 = vmatmul.bf16.gmra.mxu0 %v195
    %v341 = vpop.f32.mrf.mxu0
    %v342 = vadd.f32 %v122, %v341
    %v343 = vpop.f32.mrf.mxu0
    %v344 = vadd.f32 %v122, %v343
    %345 = vmatmul.bf16.gmra.mxu0 %v198
    %v346 = vpop.f32.mrf.mxu0
    %v347 = vadd.f32 %v122, %v346
    %v348 = vpop.f32.mrf.mxu0
    %v349 = vadd.f32 %v122, %v348
    %350 = vmatmul.bf16.gmra.mxu0 %v201
    %v351 = vpop.f32.mrf.mxu0
    %v352 = vadd.f32 %v122, %v351
    %v353 = vpop.f32.mrf.mxu0
    %v354 = vadd.f32 %v122, %v353
    %355 = vmatmul.bf16.gmra.mxu0 %v204
    %v356 = vpop.f32.mrf.mxu0
    %v357 = vadd.f32 %v122, %v356
    %v358 = vpop.f32.mrf.mxu0
    %v359 = vadd.f32 %v122, %v358
    %360 = vmatmul.bf16.gmra.mxu0 %v207
    %v361 = vpop.f32.mrf.mxu0
    %v362 = vadd.f32 %v122, %v361
    %v363 = vpop.f32.mrf.mxu0
    %v364 = vadd.f32 %v122, %v363
    %365 = vmatmul.bf16.gmra.mxu0 %v210
    %v366 = vpop.f32.mrf.mxu0
    %v367 = vadd.f32 %v122, %v366
    %v368 = vpop.f32.mrf.mxu0
    %v369 = vadd.f32 %v122, %v368
    %370 = vmatmul.bf16.gmra.mxu0 %v213
    %v371 = vpop.f32.mrf.mxu0
    %v372 = vadd.f32 %v122, %v371
    %v373 = vpop.f32.mrf.mxu0
    %v374 = vadd.f32 %v122, %v373
    %375 = vmatmul.bf16.gmra.mxu0 %v216
    %v376 = vpop.f32.mrf.mxu0
    %v377 = vadd.f32 %v122, %v376
    %v378 = vpop.f32.mrf.mxu0
    %v379 = vadd.f32 %v122, %v378
    %380 = vmatmul.bf16.gmra.mxu0 %v219
    %v381 = vpop.f32.mrf.mxu0
    %v382 = vadd.f32 %v122, %v381
    %v383 = vpop.f32.mrf.mxu0
    %v384 = vadd.f32 %v122, %v383
    %385 = vmatmul.bf16.gmra.mxu0 %v222
    %v386 = vpop.f32.mrf.mxu0
    %v387 = vadd.f32 %v122, %v386
    %v388 = vpop.f32.mrf.mxu0
    %v389 = vadd.f32 %v122, %v388
    %390 = vmatmul.bf16.gmra.mxu0 %v225
    %v391 = vpop.f32.mrf.mxu0
    %v392 = vadd.f32 %v122, %v391
    %v393 = vpop.f32.mrf.mxu0
    %v394 = vadd.f32 %v122, %v393
    %395 = vdwg.mxu0
    %v396 = vpack.c.bf16 %v237, %v237
    %v397 = vpack.c.bf16 %v239, %v239
    %v398 = vpack.c.bf16 %v242, %v242
    %v399 = vpack.c.bf16 %v244, %v244
    %v400 = vpack.c.bf16 %v247, %v247
    %v401 = vpack.c.bf16 %v249, %v249
    %v402 = vpack.c.bf16 %v252, %v252
    %v403 = vpack.c.bf16 %v254, %v254
    %v404 = vpack.c.bf16 %v257, %v257
    %v405 = vpack.c.bf16 %v259, %v259
    %v406 = vpack.c.bf16 %v262, %v262
    %v407 = vpack.c.bf16 %v264, %v264
    %v408 = vpack.c.bf16 %v267, %v267
    %v409 = vpack.c.bf16 %v269, %v269
    %v410 = vpack.c.bf16 %v272, %v272
    %v411 = vpack.c.bf16 %v274, %v274
    %v412 = vpack.c.bf16 %v277, %v277
    %v413 = vpack.c.bf16 %v279, %v279
    %v414 = vpack.c.bf16 %v282, %v282
    %v415 = vpack.c.bf16 %v284, %v284
    %v416 = vpack.c.bf16 %v287, %v287
    %v417 = vpack.c.bf16 %v289, %v289
    %v418 = vpack.c.bf16 %v292, %v292
    %v419 = vpack.c.bf16 %v294, %v294
    %v420 = vpack.c.bf16 %v297, %v297
    %v421 = vpack.c.bf16 %v299, %v299
    %v422 = vpack.c.bf16 %v302, %v302
    %v423 = vpack.c.bf16 %v304, %v304
    %v424 = vpack.c.bf16 %v307, %v307
    %v425 = vpack.c.bf16 %v309, %v309
    %v426 = vpack.c.bf16 %v312, %v312
    %v427 = vpack.c.bf16 %v314, %v314
    %v428 = vpack.c.bf16 %v317, %v317
    %v429 = vpack.c.bf16 %v319, %v319
    %v430 = vpack.c.bf16 %v322, %v322
    %v431 = vpack.c.bf16 %v324, %v324
    %v432 = vpack.c.bf16 %v327, %v327
    %v433 = vpack.c.bf16 %v329, %v329
    %v434 = vpack.c.bf16 %v332, %v332
    %v435 = vpack.c.bf16 %v334, %v334
    %v436 = vpack.c.bf16 %v337, %v337
    %v437 = vpack.c.bf16 %v339, %v339
    %v438 = vpack.c.bf16 %v342, %v342
    %v439 = vpack.c.bf16 %v344, %v344
    %v440 = vpack.c.bf16 %v347, %v347
    %v441 = vpack.c.bf16 %v349, %v349
    %v442 = vpack.c.bf16 %v352, %v352
    %v443 = vpack.c.bf16 %v354, %v354
    %v444 = vpack.c.bf16 %v357, %v357
    %v445 = vpack.c.bf16 %v359, %v359
    %v446 = vpack.c.bf16 %v362, %v362
    %v447 = vpack.c.bf16 %v364, %v364
    %v448 = vpack.c.bf16 %v367, %v367
    %v449 = vpack.c.bf16 %v369, %v369
    %v450 = vpack.c.bf16 %v372, %v372
    %v451 = vpack.c.bf16 %v374, %v374
    %v452 = vpack.c.bf16 %v377, %v377
    %v453 = vpack.c.bf16 %v379, %v379
    %v454 = vpack.c.bf16 %v382, %v382
    %v455 = vpack.c.bf16 %v384, %v384
    %v456 = vpack.c.bf16 %v387, %v387
    %v457 = vpack.c.bf16 %v389, %v389
    %v458 = vpack.c.bf16 %v392, %v392
    %v459 = vpack.c.bf16 %v394, %v394
    %v460 = vunpack.c.l.bf16 %v396
    %v461 = vunpack.c.l.bf16 %v397
    %v462 = vunpack.c.l.bf16 %v398
    %v463 = vunpack.c.l.bf16 %v399
    %v464 = vunpack.c.l.bf16 %v400
    %v465 = vunpack.c.l.bf16 %v401
    %v466 = vunpack.c.l.bf16 %v402
    %v467 = vunpack.c.l.bf16 %v403
    %v468 = vunpack.c.l.bf16 %v404
    %v469 = vunpack.c.l.bf16 %v405
    %v470 = vunpack.c.l.bf16 %v406
    %v471 = vunpack.c.l.bf16 %v407
    %v472 = vunpack.c.l.bf16 %v408
    %v473 = vunpack.c.l.bf16 %v409
    %v474 = vunpack.c.l.bf16 %v410
    %v475 = vunpack.c.l.bf16 %v411
    %v476 = vunpack.c.l.bf16 %v412
    %v477 = vunpack.c.l.bf16 %v413
    %v478 = vunpack.c.l.bf16 %v414
    %v479 = vunpack.c.l.bf16 %v415
    %v480 = vunpack.c.l.bf16 %v416
    %v481 = vunpack.c.l.bf16 %v417
    %v482 = vunpack.c.l.bf16 %v418
    %v483 = vunpack.c.l.bf16 %v419
    %v484 = vunpack.c.l.bf16 %v420
    %v485 = vunpack.c.l.bf16 %v421
    %v486 = vunpack.c.l.bf16 %v422
    %v487 = vunpack.c.l.bf16 %v423
    %v488 = vunpack.c.l.bf16 %v424
    %v489 = vunpack.c.l.bf16 %v425
    %v490 = vunpack.c.l.bf16 %v426
    %v491 = vunpack.c.l.bf16 %v427
    %v492 = vunpack.c.l.bf16 %v428
    %v493 = vunpack.c.l.bf16 %v429
    %v494 = vunpack.c.l.bf16 %v430
    %v495 = vunpack.c.l.bf16 %v431
    %v496 = vunpack.c.l.bf16 %v432
    %v497 = vunpack.c.l.bf16 %v433
    %v498 = vunpack.c.l.bf16 %v434
    %v499 = vunpack.c.l.bf16 %v435
    %v500 = vunpack.c.l.bf16 %v436
    %v501 = vunpack.c.l.bf16 %v437
    %v502 = vunpack.c.l.bf16 %v438
    %v503 = vunpack.c.l.bf16 %v439
    %v504 = vunpack.c.l.bf16 %v440
    %v505 = vunpack.c.l.bf16 %v441
    %v506 = vunpack.c.l.bf16 %v442
    %v507 = vunpack.c.l.bf16 %v443
    %v508 = vunpack.c.l.bf16 %v444
    %v509 = vunpack.c.l.bf16 %v445
    %v510 = vunpack.c.l.bf16 %v446
    %v511 = vunpack.c.l.bf16 %v447
    %v512 = vunpack.c.l.bf16 %v448
    %v513 = vunpack.c.l.bf16 %v449
    %v514 = vunpack.c.l.bf16 %v450
    %v515 = vunpack.c.l.bf16 %v451
    %v516 = vunpack.c.l.bf16 %v452
    %v517 = vunpack.c.l.bf16 %v453
    %v518 = vunpack.c.l.bf16 %v454
    %v519 = vunpack.c.l.bf16 %v455
    %v520 = vunpack.c.l.bf16 %v456
    %v521 = vunpack.c.l.bf16 %v457
    %v522 = vunpack.c.l.bf16 %v458
    %v523 = vunpack.c.l.bf16 %v459
    %v524 = vmul.f32 %v460, 0.010009766
    %v525 = vmul.f32 %v461, 0.010009766
    %v526 = vmul.f32 %v462, 0.010009766
    %v527 = vmul.f32 %v463, 0.010009766
    %v528 = vmul.f32 %v464, 0.010009766
    %v529 = vmul.f32 %v465, 0.010009766
    %v530 = vmul.f32 %v466, 0.010009766
    %v531 = vmul.f32 %v467, 0.010009766
    %v532 = vmul.f32 %v468, 0.010009766
    %v533 = vmul.f32 %v469, 0.010009766
    %v534 = vmul.f32 %v470, 0.010009766
    %v535 = vmul.f32 %v471, 0.010009766
    %v536 = vmul.f32 %v472, 0.010009766
    %v537 = vmul.f32 %v473, 0.010009766
    %v538 = vmul.f32 %v474, 0.010009766
    %v539 = vmul.f32 %v475, 0.010009766
    %v540 = vmul.f32 %v476, 0.010009766
    %v541 = vmul.f32 %v477, 0.010009766
    %v542 = vmul.f32 %v478, 0.010009766
    %v543 = vmul.f32 %v479, 0.010009766
    %v544 = vmul.f32 %v480, 0.010009766
    %v545 = vmul.f32 %v481, 0.010009766
    %v546 = vmul.f32 %v482, 0.010009766
    %v547 = vmul.f32 %v483, 0.010009766
    %v548 = vmul.f32 %v484, 0.010009766
    %v549 = vmul.f32 %v485, 0.010009766
    %v550 = vmul.f32 %v486, 0.010009766
    %v551 = vmul.f32 %v487, 0.010009766
    %v552 = vmul.f32 %v488, 0.010009766
    %v553 = vmul.f32 %v489, 0.010009766
    %v554 = vmul.f32 %v490, 0.010009766
    %v555 = vmul.f32 %v491, 0.010009766
    %v556 = vmul.f32 %v492, 0.010009766
    %v557 = vmul.f32 %v493, 0.010009766
    %v558 = vmul.f32 %v494, 0.010009766
    %v559 = vmul.f32 %v495, 0.010009766
    %v560 = vmul.f32 %v496, 0.010009766
    %v561 = vmul.f32 %v497, 0.010009766
    %v562 = vmul.f32 %v498, 0.010009766
    %v563 = vmul.f32 %v499, 0.010009766
    %v564 = vmul.f32 %v500, 0.010009766
    %v565 = vmul.f32 %v501, 0.010009766
    %v566 = vmul.f32 %v502, 0.010009766
    %v567 = vmul.f32 %v503, 0.010009766
    %v568 = vmul.f32 %v504, 0.010009766
    %v569 = vmul.f32 %v505, 0.010009766
    %v570 = vmul.f32 %v506, 0.010009766
    %v571 = vmul.f32 %v507, 0.010009766
    %v572 = vmul.f32 %v508, 0.010009766
    %v573 = vmul.f32 %v509, 0.010009766
    %v574 = vmul.f32 %v510, 0.010009766
    %v575 = vmul.f32 %v511, 0.010009766
    %v576 = vmul.f32 %v512, 0.010009766
    %v577 = vmul.f32 %v513, 0.010009766
    %v578 = vmul.f32 %v514, 0.010009766
    %v579 = vmul.f32 %v515, 0.010009766
    %v580 = vmul.f32 %v516, 0.010009766
    %v581 = vmul.f32 %v517, 0.010009766
    %v582 = vmul.f32 %v518, 0.010009766
    %v583 = vmul.f32 %v519, 0.010009766
    %v584 = vmul.f32 %v520, 0.010009766
    %v585 = vmul.f32 %v521, 0.010009766
    %v586 = vmul.f32 %v522, 0.010009766
    %v587 = vmul.f32 %v523, 0.010009766
    %v588 = vpack.c.bf16 %v524, %v524
    %v589 = vpack.c.bf16 %v525, %v525
    %v590 = vpack.c.bf16 %v526, %v526
    %v591 = vpack.c.bf16 %v527, %v527
    %v592 = vpack.c.bf16 %v528, %v528
    %v593 = vpack.c.bf16 %v529, %v529
    %v594 = vpack.c.bf16 %v530, %v530
    %v595 = vpack.c.bf16 %v531, %v531
    %v596 = vpack.c.bf16 %v532, %v532
    %v597 = vpack.c.bf16 %v533, %v533
    %v598 = vpack.c.bf16 %v534, %v534
    %v599 = vpack.c.bf16 %v535, %v535
    %v600 = vpack.c.bf16 %v536, %v536
    %v601 = vpack.c.bf16 %v537, %v537
    %v602 = vpack.c.bf16 %v538, %v538
    %v603 = vpack.c.bf16 %v539, %v539
    %v604 = vpack.c.bf16 %v540, %v540
    %v605 = vpack.c.bf16 %v541, %v541
    %v606 = vpack.c.bf16 %v542, %v542
    %v607 = vpack.c.bf16 %v543, %v543
    %v608 = vpack.c.bf16 %v544, %v544
    %v609 = vpack.c.bf16 %v545, %v545
    %v610 = vpack.c.bf16 %v546, %v546
    %v611 = vpack.c.bf16 %v547, %v547
    %v612 = vpack.c.bf16 %v548, %v548
    %v613 = vpack.c.bf16 %v549, %v549
    %v614 = vpack.c.bf16 %v550, %v550
    %v615 = vpack.c.bf16 %v551, %v551
    %v616 = vpack.c.bf16 %v552, %v552
    %v617 = vpack.c.bf16 %v553, %v553
    %v618 = vpack.c.bf16 %v554, %v554
    %v619 = vpack.c.bf16 %v555, %v555
    %v620 = vpack.c.bf16 %v556, %v556
    %v621 = vpack.c.bf16 %v557, %v557
    %v622 = vpack.c.bf16 %v558, %v558
    %v623 = vpack.c.bf16 %v559, %v559
    %v624 = vpack.c.bf16 %v560, %v560
    %v625 = vpack.c.bf16 %v561, %v561
    %v626 = vpack.c.bf16 %v562, %v562
    %v627 = vpack.c.bf16 %v563, %v563
    %v628 = vpack.c.bf16 %v564, %v564
    %v629 = vpack.c.bf16 %v565, %v565
    %v630 = vpack.c.bf16 %v566, %v566
    %v631 = vpack.c.bf16 %v567, %v567
    %v632 = vpack.c.bf16 %v568, %v568
    %v633 = vpack.c.bf16 %v569, %v569
    %v634 = vpack.c.bf16 %v570, %v570
    %v635 = vpack.c.bf16 %v571, %v571
    %v636 = vpack.c.bf16 %v572, %v572
    %v637 = vpack.c.bf16 %v573, %v573
    %v638 = vpack.c.bf16 %v574, %v574
    %v639 = vpack.c.bf16 %v575, %v575
    %v640 = vpack.c.bf16 %v576, %v576
    %v641 = vpack.c.bf16 %v577, %v577
    %v642 = vpack.c.bf16 %v578, %v578
    %v643 = vpack.c.bf16 %v579, %v579
    %v644 = vpack.c.bf16 %v580, %v580
    %v645 = vpack.c.bf16 %v581, %v581
    %v646 = vpack.c.bf16 %v582, %v582
    %v647 = vpack.c.bf16 %v583, %v583
    %v648 = vpack.c.bf16 %v584, %v584
    %v649 = vpack.c.bf16 %v585, %v585
    %v650 = vpack.c.bf16 %v586, %v586
    %v651 = vpack.c.bf16 %v587, %v587
    %v652 = vunpack.c.l.bf16 %v588
    %v653 = vunpack.c.l.bf16 %v589
    %v654 = vunpack.c.l.bf16 %v590
    %v655 = vunpack.c.l.bf16 %v591
    %v656 = vunpack.c.l.bf16 %v592
    %v657 = vunpack.c.l.bf16 %v593
    %v658 = vunpack.c.l.bf16 %v594
    %v659 = vunpack.c.l.bf16 %v595
    %v660 = vunpack.c.l.bf16 %v596
    %v661 = vunpack.c.l.bf16 %v597
    %v662 = vunpack.c.l.bf16 %v598
    %v663 = vunpack.c.l.bf16 %v599
    %v664 = vunpack.c.l.bf16 %v600
    %v665 = vunpack.c.l.bf16 %v601
    %v666 = vunpack.c.l.bf16 %v602
    %v667 = vunpack.c.l.bf16 %v603
    %v668 = vunpack.c.l.bf16 %v604
    %v669 = vunpack.c.l.bf16 %v605
    %v670 = vunpack.c.l.bf16 %v606
    %v671 = vunpack.c.l.bf16 %v607
    %v672 = vunpack.c.l.bf16 %v608
    %v673 = vunpack.c.l.bf16 %v609
    %v674 = vunpack.c.l.bf16 %v610
    %v675 = vunpack.c.l.bf16 %v611
    %v676 = vunpack.c.l.bf16 %v612
    %v677 = vunpack.c.l.bf16 %v613
    %v678 = vunpack.c.l.bf16 %v614
    %v679 = vunpack.c.l.bf16 %v615
    %v680 = vunpack.c.l.bf16 %v616
    %v681 = vunpack.c.l.bf16 %v617
    %v682 = vunpack.c.l.bf16 %v618
    %v683 = vunpack.c.l.bf16 %v619
    %v684 = vunpack.c.l.bf16 %v620
    %v685 = vunpack.c.l.bf16 %v621
    %v686 = vunpack.c.l.bf16 %v622
    %v687 = vunpack.c.l.bf16 %v623
    %v688 = vunpack.c.l.bf16 %v624
    %v689 = vunpack.c.l.bf16 %v625
    %v690 = vunpack.c.l.bf16 %v626
    %v691 = vunpack.c.l.bf16 %v627
    %v692 = vunpack.c.l.bf16 %v628
    %v693 = vunpack.c.l.bf16 %v629
    %v694 = vunpack.c.l.bf16 %v630
    %v695 = vunpack.c.l.bf16 %v631
    %v696 = vunpack.c.l.bf16 %v632
    %v697 = vunpack.c.l.bf16 %v633
    %v698 = vunpack.c.l.bf16 %v634
    %v699 = vunpack.c.l.bf16 %v635
    %v700 = vunpack.c.l.bf16 %v636
    %v701 = vunpack.c.l.bf16 %v637
    %v702 = vunpack.c.l.bf16 %v638
    %v703 = vunpack.c.l.bf16 %v639
    %v704 = vunpack.c.l.bf16 %v640
    %v705 = vunpack.c.l.bf16 %v641
    %v706 = vunpack.c.l.bf16 %v642
    %v707 = vunpack.c.l.bf16 %v643
    %v708 = vunpack.c.l.bf16 %v644
    %v709 = vunpack.c.l.bf16 %v645
    %v710 = vunpack.c.l.bf16 %v646
    %v711 = vunpack.c.l.bf16 %v647
    %v712 = vunpack.c.l.bf16 %v648
    %v713 = vunpack.c.l.bf16 %v649
    %v714 = vunpack.c.l.bf16 %v650
    %v715 = vunpack.c.l.bf16 %v651
    %v716 = vmax.f32 %v460, %v652
    %v717 = vmax.f32 %v461, %v653
    %v718 = vmax.f32 %v462, %v654
    %v719 = vmax.f32 %v463, %v655
    %v720 = vmax.f32 %v464, %v656
    %v721 = vmax.f32 %v465, %v657
    %v722 = vmax.f32 %v466, %v658
    %v723 = vmax.f32 %v467, %v659
    %v724 = vmax.f32 %v468, %v660
    %v725 = vmax.f32 %v469, %v661
    %v726 = vmax.f32 %v470, %v662
    %v727 = vmax.f32 %v471, %v663
    %v728 = vmax.f32 %v472, %v664
    %v729 = vmax.f32 %v473, %v665
    %v730 = vmax.f32 %v474, %v666
    %v731 = vmax.f32 %v475, %v667
    %v732 = vmax.f32 %v476, %v668
    %v733 = vmax.f32 %v477, %v669
    %v734 = vmax.f32 %v478, %v670
    %v735 = vmax.f32 %v479, %v671
    %v736 = vmax.f32 %v480, %v672
    %v737 = vmax.f32 %v481, %v673
    %v738 = vmax.f32 %v482, %v674
    %v739 = vmax.f32 %v483, %v675
    %v740 = vmax.f32 %v484, %v676
    %v741 = vmax.f32 %v485, %v677
    %v742 = vmax.f32 %v486, %v678
    %v743 = vmax.f32 %v487, %v679
    %v744 = vmax.f32 %v488, %v680
    %v745 = vmax.f32 %v489, %v681
    %v746 = vmax.f32 %v490, %v682
    %v747 = vmax.f32 %v491, %v683
    %v748 = vmax.f32 %v492, %v684
    %v749 = vmax.f32 %v493, %v685
    %v750 = vmax.f32 %v494, %v686
    %v751 = vmax.f32 %v495, %v687
    %v752 = vmax.f32 %v496, %v688
    %v753 = vmax.f32 %v497, %v689
    %v754 = vmax.f32 %v498, %v690
    %v755 = vmax.f32 %v499, %v691
    %v756 = vmax.f32 %v500, %v692
    %v757 = vmax.f32 %v501, %v693
    %v758 = vmax.f32 %v502, %v694
    %v759 = vmax.f32 %v503, %v695
    %v760 = vmax.f32 %v504, %v696
    %v761 = vmax.f32 %v505, %v697
    %v762 = vmax.f32 %v506, %v698
    %v763 = vmax.f32 %v507, %v699
    %v764 = vmax.f32 %v508, %v700
    %v765 = vmax.f32 %v509, %v701
    %v766 = vmax.f32 %v510, %v702
    %v767 = vmax.f32 %v511, %v703
    %v768 = vmax.f32 %v512, %v704
    %v769 = vmax.f32 %v513, %v705
    %v770 = vmax.f32 %v514, %v706
    %v771 = vmax.f32 %v515, %v707
    %v772 = vmax.f32 %v516, %v708
    %v773 = vmax.f32 %v517, %v709
    %v774 = vmax.f32 %v518, %v710
    %v775 = vmax.f32 %v519, %v711
    %v776 = vmax.f32 %v520, %v712
    %v777 = vmax.f32 %v521, %v713
    %v778 = vmax.f32 %v522, %v714
    %v779 = vmax.f32 %v523, %v715
    %v780 = vpack.c.bf16 %v717, %v716
    %v781 = vpack.c.bf16 %v719, %v718
    %v782 = vpack.c.bf16 %v721, %v720
    %v783 = vpack.c.bf16 %v723, %v722
    %v784 = vpack.c.bf16 %v725, %v724
    %v785 = vpack.c.bf16 %v727, %v726
    %v786 = vpack.c.bf16 %v729, %v728
    %v787 = vpack.c.bf16 %v731, %v730
    %v788 = vpack.c.bf16 %v733, %v732
    %v789 = vpack.c.bf16 %v735, %v734
    %v790 = vpack.c.bf16 %v737, %v736
    %v791 = vpack.c.bf16 %v739, %v738
    %v792 = vpack.c.bf16 %v741, %v740
    %v793 = vpack.c.bf16 %v743, %v742
    %v794 = vpack.c.bf16 %v745, %v744
    %v795 = vpack.c.bf16 %v747, %v746
    %v796 = vpack.c.bf16 %v749, %v748
    %v797 = vpack.c.bf16 %v751, %v750
    %v798 = vpack.c.bf16 %v753, %v752
    %v799 = vpack.c.bf16 %v755, %v754
    %v800 = vpack.c.bf16 %v757, %v756
    %v801 = vpack.c.bf16 %v759, %v758
    %v802 = vpack.c.bf16 %v761, %v760
    %v803 = vpack.c.bf16 %v763, %v762
    %v804 = vpack.c.bf16 %v765, %v764
    %v805 = vpack.c.bf16 %v767, %v766
    %v806 = vpack.c.bf16 %v769, %v768
    %v807 = vpack.c.bf16 %v771, %v770
    %v808 = vpack.c.bf16 %v773, %v772
    %v809 = vpack.c.bf16 %v775, %v774
    %v810 = vpack.c.bf16 %v777, %v776
    %v811 = vpack.c.bf16 %v779, %v778
    %v812 = vld [vmem:[%s3] sm:$0xf]
    %v813 = vld [vmem:[%s3 + $0x4] sm:$0xf]
    %v814 = vld [vmem:[%s3 + $0x8] sm:$0xf]
    %v815 = vld [vmem:[%s3 + $0xc] sm:$0xf]
    %v816 = vld [vmem:[%s3 + $0x10] sm:$0xf]
    %v817 = vld [vmem:[%s3 + $0x14] sm:$0xf]
    %v818 = vld [vmem:[%s3 + $0x18] sm:$0xf]
    %v819 = vld [vmem:[%s3 + $0x1c] sm:$0xf]
    %v820 = vld [vmem:[%s3 + $0x20] sm:$0xf]
    %v821 = vld [vmem:[%s3 + $0x24] sm:$0xf]
    %v822 = vld [vmem:[%s3 + $0x28] sm:$0xf]
    %v823 = vld [vmem:[%s3 + $0x2c] sm:$0xf]
    %v824 = vld [vmem:[%s3 + $0x30] sm:$0xf]
    %v825 = vld [vmem:[%s3 + $0x34] sm:$0xf]
    %v826 = vld [vmem:[%s3 + $0x38] sm:$0xf]
    %v827 = vld [vmem:[%s3 + $0x3c] sm:$0xf]
    %v828 = vld [vmem:[%s4] sm:$0x1]
    %v830 = vperm.slane %v828, 0
    %v848 = vunpack.c.l.b16 %v812
    %v849 = vunpack.c.l.b16 %v813
    %v850 = vunpack.c.l.b16 %v814
    %v851 = vunpack.c.l.b16 %v815
    %v852 = vunpack.c.l.b16 %v816
    %v853 = vunpack.c.l.b16 %v817
    %v854 = vunpack.c.l.b16 %v818
    %v855 = vunpack.c.l.b16 %v819
    %v856 = vunpack.c.l.b16 %v820
    %v857 = vunpack.c.l.b16 %v821
    %v858 = vunpack.c.l.b16 %v822
    %v859 = vunpack.c.l.b16 %v823
    %v860 = vunpack.c.l.b16 %v824
    %v861 = vunpack.c.l.b16 %v825
    %v862 = vunpack.c.l.b16 %v826
    %v863 = vunpack.c.l.b16 %v827
    %v864 = vpack.c.b16 %v849, %v848
    %v865 = vpack.c.b16 %v851, %v850
    %v866 = vpack.c.b16 %v853, %v852
    %v867 = vpack.c.b16 %v855, %v854
    %v868 = vpack.c.b16 %v857, %v856
    %v869 = vpack.c.b16 %v859, %v858
    %v870 = vpack.c.b16 %v861, %v860
    %v871 = vpack.c.b16 %v863, %v862
    %880 = vmatpush.bf16.msra.mxu0 %v871
    %881 = vmatpush.bf16.msra.mxu0 %v870
    %882 = vmatpush.bf16.msra.mxu0 %v869
    %883 = vmatpush.bf16.msra.mxu0 %v868
    %884 = vmatpush.bf16.msra.mxu0 %v867
    %885 = vmatpush.bf16.msra.mxu0 %v866
    %886 = vmatpush.bf16.msra.mxu0 %v865
    %887 = vmatpush.bf16.msra.mxu0 %v864
    %888 = vmatmul.bf16.gmra.mxu0 %v780
    %v889 = vpop.f32.mrf.mxu0
    %v890 = vadd.f32 %v830, %v889
    %v891 = vpop.f32.mrf.mxu0
    %v892 = vadd.f32 %v830, %v891
    %893 = vmatmul.bf16.gmra.mxu0 %v781
    %v894 = vpop.f32.mrf.mxu0
    %v895 = vadd.f32 %v830, %v894
    %v896 = vpop.f32.mrf.mxu0
    %v897 = vadd.f32 %v830, %v896
    %898 = vmatmul.bf16.gmra.mxu0 %v782
    %v899 = vpop.f32.mrf.mxu0
    %v900 = vadd.f32 %v830, %v899
    %v901 = vpop.f32.mrf.mxu0
    %v902 = vadd.f32 %v830, %v901
    %903 = vmatmul.bf16.gmra.mxu0 %v783
    %v904 = vpop.f32.mrf.mxu0
    %v905 = vadd.f32 %v830, %v904
    %v906 = vpop.f32.mrf.mxu0
    %v907 = vadd.f32 %v830, %v906
    %908 = vmatmul.bf16.gmra.mxu0 %v784
    %v909 = vpop.f32.mrf.mxu0
    %v910 = vadd.f32 %v830, %v909
    %v911 = vpop.f32.mrf.mxu0
    %v912 = vadd.f32 %v830, %v911
    %913 = vmatmul.bf16.gmra.mxu0 %v785
    %v914 = vpop.f32.mrf.mxu0
    %v915 = vadd.f32 %v830, %v914
    %v916 = vpop.f32.mrf.mxu0
    %v917 = vadd.f32 %v830, %v916
    %918 = vmatmul.bf16.gmra.mxu0 %v786
    %v919 = vpop.f32.mrf.mxu0
    %v920 = vadd.f32 %v830, %v919
    %v921 = vpop.f32.mrf.mxu0
    %v922 = vadd.f32 %v830, %v921
    %923 = vmatmul.bf16.gmra.mxu0 %v787
    %v924 = vpop.f32.mrf.mxu0
    %v925 = vadd.f32 %v830, %v924
    %v926 = vpop.f32.mrf.mxu0
    %v927 = vadd.f32 %v830, %v926
    %928 = vmatmul.bf16.gmra.mxu0 %v788
    %v929 = vpop.f32.mrf.mxu0
    %v930 = vadd.f32 %v830, %v929
    %v931 = vpop.f32.mrf.mxu0
    %v932 = vadd.f32 %v830, %v931
    %933 = vmatmul.bf16.gmra.mxu0 %v789
    %v934 = vpop.f32.mrf.mxu0
    %v935 = vadd.f32 %v830, %v934
    %v936 = vpop.f32.mrf.mxu0
    %v937 = vadd.f32 %v830, %v936
    %938 = vmatmul.bf16.gmra.mxu0 %v790
    %v939 = vpop.f32.mrf.mxu0
    %v940 = vadd.f32 %v830, %v939
    %v941 = vpop.f32.mrf.mxu0
    %v942 = vadd.f32 %v830, %v941
    %943 = vmatmul.bf16.gmra.mxu0 %v791
    %v944 = vpop.f32.mrf.mxu0
    %v945 = vadd.f32 %v830, %v944
    %v946 = vpop.f32.mrf.mxu0
    %v947 = vadd.f32 %v830, %v946
    %948 = vmatmul.bf16.gmra.mxu0 %v792
    %v949 = vpop.f32.mrf.mxu0
    %v950 = vadd.f32 %v830, %v949
    %v951 = vpop.f32.mrf.mxu0
    %v952 = vadd.f32 %v830, %v951
    %953 = vmatmul.bf16.gmra.mxu0 %v793
    %v954 = vpop.f32.mrf.mxu0
    %v955 = vadd.f32 %v830, %v954
    %v956 = vpop.f32.mrf.mxu0
    %v957 = vadd.f32 %v830, %v956
    %958 = vmatmul.bf16.gmra.mxu0 %v794
    %v959 = vpop.f32.mrf.mxu0
    %v960 = vadd.f32 %v830, %v959
    %v961 = vpop.f32.mrf.mxu0
    %v962 = vadd.f32 %v830, %v961
    %963 = vmatmul.bf16.gmra.mxu0 %v795
    %v964 = vpop.f32.mrf.mxu0
    %v965 = vadd.f32 %v830, %v964
    %v966 = vpop.f32.mrf.mxu0
    %v967 = vadd.f32 %v830, %v966
    %968 = vmatmul.bf16.gmra.mxu0 %v796
    %v969 = vpop.f32.mrf.mxu0
    %v970 = vadd.f32 %v830, %v969
    %v971 = vpop.f32.mrf.mxu0
    %v972 = vadd.f32 %v830, %v971
    %973 = vmatmul.bf16.gmra.mxu0 %v797
    %v974 = vpop.f32.mrf.mxu0
    %v975 = vadd.f32 %v830, %v974
    %v976 = vpop.f32.mrf.mxu0
    %v977 = vadd.f32 %v830, %v976
    %978 = vmatmul.bf16.gmra.mxu0 %v798
    %v979 = vpop.f32.mrf.mxu0
    %v980 = vadd.f32 %v830, %v979
    %v981 = vpop.f32.mrf.mxu0
    %v982 = vadd.f32 %v830, %v981
    %983 = vmatmul.bf16.gmra.mxu0 %v799
    %v984 = vpop.f32.mrf.mxu0
    %v985 = vadd.f32 %v830, %v984
    %v986 = vpop.f32.mrf.mxu0
    %v987 = vadd.f32 %v830, %v986
    %988 = vmatmul.bf16.gmra.mxu0 %v800
    %v989 = vpop.f32.mrf.mxu0
    %v990 = vadd.f32 %v830, %v989
    %v991 = vpop.f32.mrf.mxu0
    %v992 = vadd.f32 %v830, %v991
    %993 = vmatmul.bf16.gmra.mxu0 %v801
    %v994 = vpop.f32.mrf.mxu0
    %v995 = vadd.f32 %v830, %v994
    %v996 = vpop.f32.mrf.mxu0
    %v997 = vadd.f32 %v830, %v996
    %998 = vmatmul.bf16.gmra.mxu0 %v802
    %v999 = vpop.f32.mrf.mxu0
    %v1000 = vadd.f32 %v830, %v999
    %v1001 = vpop.f32.mrf.mxu0
    %v1002 = vadd.f32 %v830, %v1001
    %1003 = vmatmul.bf16.gmra.mxu0 %v803
    %v1004 = vpop.f32.mrf.mxu0
    %v1005 = vadd.f32 %v830, %v1004
    %v1006 = vpop.f32.mrf.mxu0
    %v1007 = vadd.f32 %v830, %v1006
    %1008 = vmatmul.bf16.gmra.mxu0 %v804
    %v1009 = vpop.f32.mrf.mxu0
    %v1010 = vadd.f32 %v830, %v1009
    %v1011 = vpop.f32.mrf.mxu0
    %v1012 = vadd.f32 %v830, %v1011
    %1013 = vmatmul.bf16.gmra.mxu0 %v805
    %v1014 = vpop.f32.mrf.mxu0
    %v1015 = vadd.f32 %v830, %v1014
    %v1016 = vpop.f32.mrf.mxu0
    %v1017 = vadd.f32 %v830, %v1016
    %1018 = vmatmul.bf16.gmra.mxu0 %v806
    %v1019 = vpop.f32.mrf.mxu0
    %v1020 = vadd.f32 %v830, %v1019
    %v1021 = vpop.f32.mrf.mxu0
    %v1022 = vadd.f32 %v830, %v1021
    %1023 = vmatmul.bf16.gmra.mxu0 %v807
    %v1024 = vpop.f32.mrf.mxu0
    %v1025 = vadd.f32 %v830, %v1024
    %v1026 = vpop.f32.mrf.mxu0
    %v1027 = vadd.f32 %v830, %v1026
    %1028 = vmatmul.bf16.gmra.mxu0 %v808
    %v1029 = vpop.f32.mrf.mxu0
    %v1030 = vadd.f32 %v830, %v1029
    %v1031 = vpop.f32.mrf.mxu0
    %v1032 = vadd.f32 %v830, %v1031
    %1033 = vmatmul.bf16.gmra.mxu0 %v809
    %v1034 = vpop.f32.mrf.mxu0
    %v1035 = vadd.f32 %v830, %v1034
    %v1036 = vpop.f32.mrf.mxu0
    %v1037 = vadd.f32 %v830, %v1036
    %1038 = vmatmul.bf16.gmra.mxu0 %v810
    %v1039 = vpop.f32.mrf.mxu0
    %v1040 = vadd.f32 %v830, %v1039
    %v1041 = vpop.f32.mrf.mxu0
    %v1042 = vadd.f32 %v830, %v1041
    %1043 = vmatmul.bf16.gmra.mxu0 %v811
    %v1044 = vpop.f32.mrf.mxu0
    %v1045 = vadd.f32 %v830, %v1044
    %v1046 = vpop.f32.mrf.mxu0
    %v1047 = vadd.f32 %v830, %v1046
    %1048 = vdwg.mxu0
    %1049 = vmax.xlane.f32.xlu0 %v890
    %v1050 = vpop.xlane.xlu0 %1049
    %1051 = vmax.xlane.f32.xlu0 %v892
    %v1052 = vpop.xlane.xlu0 %1051
    %1053 = vmax.xlane.f32.xlu0 %v895
    %v1054 = vpop.xlane.xlu0 %1053
    %1055 = vmax.xlane.f32.xlu0 %v897
    %v1056 = vpop.xlane.xlu0 %1055
    %1057 = vmax.xlane.f32.xlu0 %v900
    %v1058 = vpop.xlane.xlu0 %1057
    %1059 = vmax.xlane.f32.xlu0 %v902
    %v1060 = vpop.xlane.xlu0 %1059
    %1061 = vmax.xlane.f32.xlu0 %v905
    %v1062 = vpop.xlane.xlu0 %1061
    %1063 = vmax.xlane.f32.xlu0 %v907
    %v1064 = vpop.xlane.xlu0 %1063
    %1065 = vmax.xlane.f32.xlu0 %v910
    %v1066 = vpop.xlane.xlu0 %1065
    %1067 = vmax.xlane.f32.xlu0 %v912
    %v1068 = vpop.xlane.xlu0 %1067
    %1069 = vmax.xlane.f32.xlu0 %v915
    %v1070 = vpop.xlane.xlu0 %1069
    %1071 = vmax.xlane.f32.xlu0 %v917
    %v1072 = vpop.xlane.xlu0 %1071
    %1073 = vmax.xlane.f32.xlu0 %v920
    %v1074 = vpop.xlane.xlu0 %1073
    %1075 = vmax.xlane.f32.xlu0 %v922
    %v1076 = vpop.xlane.xlu0 %1075
    %1077 = vmax.xlane.f32.xlu0 %v925
    %v1078 = vpop.xlane.xlu0 %1077
    %1079 = vmax.xlane.f32.xlu0 %v927
    %v1080 = vpop.xlane.xlu0 %1079
    %1081 = vmax.xlane.f32.xlu0 %v930
    %v1082 = vpop.xlane.xlu0 %1081
    %1083 = vmax.xlane.f32.xlu0 %v932
    %v1084 = vpop.xlane.xlu0 %1083
    %1085 = vmax.xlane.f32.xlu0 %v935
    %v1086 = vpop.xlane.xlu0 %1085
    %1087 = vmax.xlane.f32.xlu0 %v937
    %v1088 = vpop.xlane.xlu0 %1087
    %1089 = vmax.xlane.f32.xlu0 %v940
    %v1090 = vpop.xlane.xlu0 %1089
    %1091 = vmax.xlane.f32.xlu0 %v942
    %v1092 = vpop.xlane.xlu0 %1091
    %1093 = vmax.xlane.f32.xlu0 %v945
    %v1094 = vpop.xlane.xlu0 %1093
    %1095 = vmax.xlane.f32.xlu0 %v947
    %v1096 = vpop.xlane.xlu0 %1095
    %1097 = vmax.xlane.f32.xlu0 %v950
    %v1098 = vpop.xlane.xlu0 %1097
    %1099 = vmax.xlane.f32.xlu0 %v952
    %v1100 = vpop.xlane.xlu0 %1099
    %1101 = vmax.xlane.f32.xlu0 %v955
    %v1102 = vpop.xlane.xlu0 %1101
    %1103 = vmax.xlane.f32.xlu0 %v957
    %v1104 = vpop.xlane.xlu0 %1103
    %1105 = vmax.xlane.f32.xlu0 %v960
    %v1106 = vpop.xlane.xlu0 %1105
    %1107 = vmax.xlane.f32.xlu0 %v962
    %v1108 = vpop.xlane.xlu0 %1107
    %1109 = vmax.xlane.f32.xlu0 %v965
    %v1110 = vpop.xlane.xlu0 %1109
    %1111 = vmax.xlane.f32.xlu0 %v967
    %v1112 = vpop.xlane.xlu0 %1111
    %1113 = vmax.xlane.f32.xlu0 %v970
    %v1114 = vpop.xlane.xlu0 %1113
    %1115 = vmax.xlane.f32.xlu0 %v972
    %v1116 = vpop.xlane.xlu0 %1115
    %1117 = vmax.xlane.f32.xlu0 %v975
    %v1118 = vpop.xlane.xlu0 %1117
    %1119 = vmax.xlane.f32.xlu0 %v977
    %v1120 = vpop.xlane.xlu0 %1119
    %1121 = vmax.xlane.f32.xlu0 %v980
    %v1122 = vpop.xlane.xlu0 %1121
    %1123 = vmax.xlane.f32.xlu0 %v982
    %v1124 = vpop.xlane.xlu0 %1123
    %1125 = vmax.xlane.f32.xlu0 %v985
    %v1126 = vpop.xlane.xlu0 %1125
    %1127 = vmax.xlane.f32.xlu0 %v987
    %v1128 = vpop.xlane.xlu0 %1127
    %1129 = vmax.xlane.f32.xlu0 %v990
    %v1130 = vpop.xlane.xlu0 %1129
    %1131 = vmax.xlane.f32.xlu0 %v992
    %v1132 = vpop.xlane.xlu0 %1131
    %1133 = vmax.xlane.f32.xlu0 %v995
    %v1134 = vpop.xlane.xlu0 %1133
    %1135 = vmax.xlane.f32.xlu0 %v997
    %v1136 = vpop.xlane.xlu0 %1135
    %1137 = vmax.xlane.f32.xlu0 %v1000
    %v1138 = vpop.xlane.xlu0 %1137
    %1139 = vmax.xlane.f32.xlu0 %v1002
    %v1140 = vpop.xlane.xlu0 %1139
    %1141 = vmax.xlane.f32.xlu0 %v1005
    %v1142 = vpop.xlane.xlu0 %1141
    %1143 = vmax.xlane.f32.xlu0 %v1007
    %v1144 = vpop.xlane.xlu0 %1143
    %1145 = vmax.xlane.f32.xlu0 %v1010
    %v1146 = vpop.xlane.xlu0 %1145
    %1147 = vmax.xlane.f32.xlu0 %v1012
    %v1148 = vpop.xlane.xlu0 %1147
    %1149 = vmax.xlane.f32.xlu0 %v1015
    %v1150 = vpop.xlane.xlu0 %1149
    %1151 = vmax.xlane.f32.xlu0 %v1017
    %v1152 = vpop.xlane.xlu0 %1151
    %1153 = vmax.xlane.f32.xlu0 %v1020
    %v1154 = vpop.xlane.xlu0 %1153
    %1155 = vmax.xlane.f32.xlu0 %v1022
    %v1156 = vpop.xlane.xlu0 %1155
    %1157 = vmax.xlane.f32.xlu0 %v1025
    %v1158 = vpop.xlane.xlu0 %1157
    %1159 = vmax.xlane.f32.xlu0 %v1027
    %v1160 = vpop.xlane.xlu0 %1159
    %1161 = vmax.xlane.f32.xlu0 %v1030
    %v1162 = vpop.xlane.xlu0 %1161
    %1163 = vmax.xlane.f32.xlu0 %v1032
    %v1164 = vpop.xlane.xlu0 %1163
    %1165 = vmax.xlane.f32.xlu0 %v1035
    %v1166 = vpop.xlane.xlu0 %1165
    %1167 = vmax.xlane.f32.xlu0 %v1037
    %v1168 = vpop.xlane.xlu0 %1167
    %1169 = vmax.xlane.f32.xlu0 %v1040
    %v1170 = vpop.xlane.xlu0 %1169
    %1171 = vmax.xlane.f32.xlu0 %v1042
    %v1172 = vpop.xlane.xlu0 %1171
    %1173 = vmax.xlane.f32.xlu0 %v1045
    %v1174 = vpop.xlane.xlu0 %1173
    %1175 = vmax.xlane.f32.xlu0 %v1047
    %v1176 = vpop.xlane.xlu0 %1175
    %v1177 = vsub.f32 %v890, %v1050
    %v1178 = vsub.f32 %v892, %v1052
    %v1179 = vsub.f32 %v895, %v1054
    %v1180 = vsub.f32 %v897, %v1056
    %v1181 = vsub.f32 %v900, %v1058
    %v1182 = vsub.f32 %v902, %v1060
    %v1183 = vsub.f32 %v905, %v1062
    %v1184 = vsub.f32 %v907, %v1064
    %v1185 = vsub.f32 %v910, %v1066
    %v1186 = vsub.f32 %v912, %v1068
    %v1187 = vsub.f32 %v915, %v1070
    %v1188 = vsub.f32 %v917, %v1072
    %v1189 = vsub.f32 %v920, %v1074
    %v1190 = vsub.f32 %v922, %v1076
    %v1191 = vsub.f32 %v925, %v1078
    %v1192 = vsub.f32 %v927, %v1080
    %v1193 = vsub.f32 %v930, %v1082
    %v1194 = vsub.f32 %v932, %v1084
    %v1195 = vsub.f32 %v935, %v1086
    %v1196 = vsub.f32 %v937, %v1088
    %v1197 = vsub.f32 %v940, %v1090
    %v1198 = vsub.f32 %v942, %v1092
    %v1199 = vsub.f32 %v945, %v1094
    %v1200 = vsub.f32 %v947, %v1096
    %v1201 = vsub.f32 %v950, %v1098
    %v1202 = vsub.f32 %v952, %v1100
    %v1203 = vsub.f32 %v955, %v1102
    %v1204 = vsub.f32 %v957, %v1104
    %v1205 = vsub.f32 %v960, %v1106
    %v1206 = vsub.f32 %v962, %v1108
    %v1207 = vsub.f32 %v965, %v1110
    %v1208 = vsub.f32 %v967, %v1112
    %v1209 = vsub.f32 %v970, %v1114
    %v1210 = vsub.f32 %v972, %v1116
    %v1211 = vsub.f32 %v975, %v1118
    %v1212 = vsub.f32 %v977, %v1120
    %v1213 = vsub.f32 %v980, %v1122
    %v1214 = vsub.f32 %v982, %v1124
    %v1215 = vsub.f32 %v985, %v1126
    %v1216 = vsub.f32 %v987, %v1128
    %v1217 = vsub.f32 %v990, %v1130
    %v1218 = vsub.f32 %v992, %v1132
    %v1219 = vsub.f32 %v995, %v1134
    %v1220 = vsub.f32 %v997, %v1136
    %v1221 = vsub.f32 %v1000, %v1138
    %v1222 = vsub.f32 %v1002, %v1140
    %v1223 = vsub.f32 %v1005, %v1142
    %v1224 = vsub.f32 %v1007, %v1144
    %v1225 = vsub.f32 %v1010, %v1146
    %v1226 = vsub.f32 %v1012, %v1148
    %v1227 = vsub.f32 %v1015, %v1150
    %v1228 = vsub.f32 %v1017, %v1152
    %v1229 = vsub.f32 %v1020, %v1154
    %v1230 = vsub.f32 %v1022, %v1156
    %v1231 = vsub.f32 %v1025, %v1158
    %v1232 = vsub.f32 %v1027, %v1160
    %v1233 = vsub.f32 %v1030, %v1162
    %v1234 = vsub.f32 %v1032, %v1164
    %v1235 = vsub.f32 %v1035, %v1166
    %v1236 = vsub.f32 %v1037, %v1168
    %v1237 = vsub.f32 %v1040, %v1170
    %v1238 = vsub.f32 %v1042, %v1172
    %v1239 = vsub.f32 %v1045, %v1174
    %v1240 = vsub.f32 %v1047, %v1176
    %v1241 = vmul.f32 %v1177, 1.442695
    %v1242 = vpow.pop %v1241
    %v1243 = vmul.f32 %v1178, 1.442695
    %v1244 = vpow.pop %v1243
    %v1245 = vmul.f32 %v1179, 1.442695
    %v1246 = vpow.pop %v1245
    %v1247 = vmul.f32 %v1180, 1.442695
    %v1248 = vpow.pop %v1247
    %v1249 = vmul.f32 %v1181, 1.442695
    %v1250 = vpow.pop %v1249
    %v1251 = vmul.f32 %v1182, 1.442695
    %v1252 = vpow.pop %v1251
    %v1253 = vmul.f32 %v1183, 1.442695
    %v1254 = vpow.pop %v1253
    %v1255 = vmul.f32 %v1184, 1.442695
    %v1256 = vpow.pop %v1255
    %v1257 = vmul.f32 %v1185, 1.442695
    %v1258 = vpow.pop %v1257
    %v1259 = vmul.f32 %v1186, 1.442695
    %v1260 = vpow.pop %v1259
    %v1261 = vmul.f32 %v1187, 1.442695
    %v1262 = vpow.pop %v1261
    %v1263 = vmul.f32 %v1188, 1.442695
    %v1264 = vpow.pop %v1263
    %v1265 = vmul.f32 %v1189, 1.442695
    %v1266 = vpow.pop %v1265
    %v1267 = vmul.f32 %v1190, 1.442695
    %v1268 = vpow.pop %v1267
    %v1269 = vmul.f32 %v1191, 1.442695
    %v1270 = vpow.pop %v1269
    %v1271 = vmul.f32 %v1192, 1.442695
    %v1272 = vpow.pop %v1271
    %v1273 = vmul.f32 %v1193, 1.442695
    %v1274 = vpow.pop %v1273
    %v1275 = vmul.f32 %v1194, 1.442695
    %v1276 = vpow.pop %v1275
    %v1277 = vmul.f32 %v1195, 1.442695
    %v1278 = vpow.pop %v1277
    %v1279 = vmul.f32 %v1196, 1.442695
    %v1280 = vpow.pop %v1279
    %v1281 = vmul.f32 %v1197, 1.442695
    %v1282 = vpow.pop %v1281
    %v1283 = vmul.f32 %v1198, 1.442695
    %v1284 = vpow.pop %v1283
    %v1285 = vmul.f32 %v1199, 1.442695
    %v1286 = vpow.pop %v1285
    %v1287 = vmul.f32 %v1200, 1.442695
    %v1288 = vpow.pop %v1287
    %v1289 = vmul.f32 %v1201, 1.442695
    %v1290 = vpow.pop %v1289
    %v1291 = vmul.f32 %v1202, 1.442695
    %v1292 = vpow.pop %v1291
    %v1293 = vmul.f32 %v1203, 1.442695
    %v1294 = vpow.pop %v1293
    %v1295 = vmul.f32 %v1204, 1.442695
    %v1296 = vpow.pop %v1295
    %v1297 = vmul.f32 %v1205, 1.442695
    %v1298 = vpow.pop %v1297
    %v1299 = vmul.f32 %v1206, 1.442695
    %v1300 = vpow.pop %v1299
    %v1301 = vmul.f32 %v1207, 1.442695
    %v1302 = vpow.pop %v1301
    %v1303 = vmul.f32 %v1208, 1.442695
    %v1304 = vpow.pop %v1303
    %v1305 = vmul.f32 %v1209, 1.442695
    %v1306 = vpow.pop %v1305
    %v1307 = vmul.f32 %v1210, 1.442695
    %v1308 = vpow.pop %v1307
    %v1309 = vmul.f32 %v1211, 1.442695
    %v1310 = vpow.pop %v1309
    %v1311 = vmul.f32 %v1212, 1.442695
    %v1312 = vpow.pop %v1311
    %v1313 = vmul.f32 %v1213, 1.442695
    %v1314 = vpow.pop %v1313
    %v1315 = vmul.f32 %v1214, 1.442695
    %v1316 = vpow.pop %v1315
    %v1317 = vmul.f32 %v1215, 1.442695
    %v1318 = vpow.pop %v1317
    %v1319 = vmul.f32 %v1216, 1.442695
    %v1320 = vpow.pop %v1319
    %v1321 = vmul.f32 %v1217, 1.442695
    %v1322 = vpow.pop %v1321
    %v1323 = vmul.f32 %v1218, 1.442695
    %v1324 = vpow.pop %v1323
    %v1325 = vmul.f32 %v1219, 1.442695
    %v1326 = vpow.pop %v1325
    %v1327 = vmul.f32 %v1220, 1.442695
    %v1328 = vpow.pop %v1327
    %v1329 = vmul.f32 %v1221, 1.442695
    %v1330 = vpow.pop %v1329
    %v1331 = vmul.f32 %v1222, 1.442695
    %v1332 = vpow.pop %v1331
    %v1333 = vmul.f32 %v1223, 1.442695
    %v1334 = vpow.pop %v1333
    %v1335 = vmul.f32 %v1224, 1.442695
    %v1336 = vpow.pop %v1335
    %v1337 = vmul.f32 %v1225, 1.442695
    %v1338 = vpow.pop %v1337
    %v1339 = vmul.f32 %v1226, 1.442695
    %v1340 = vpow.pop %v1339
    %v1341 = vmul.f32 %v1227, 1.442695
    %v1342 = vpow.pop %v1341
    %v1343 = vmul.f32 %v1228, 1.442695
    %v1344 = vpow.pop %v1343
    %v1345 = vmul.f32 %v1229, 1.442695
    %v1346 = vpow.pop %v1345
    %v1347 = vmul.f32 %v1230, 1.442695
    %v1348 = vpow.pop %v1347
    %v1349 = vmul.f32 %v1231, 1.442695
    %v1350 = vpow.pop %v1349
    %v1351 = vmul.f32 %v1232, 1.442695
    %v1352 = vpow.pop %v1351
    %v1353 = vmul.f32 %v1233, 1.442695
    %v1354 = vpow.pop %v1353
    %v1355 = vmul.f32 %v1234, 1.442695
    %v1356 = vpow.pop %v1355
    %v1357 = vmul.f32 %v1235, 1.442695
    %v1358 = vpow.pop %v1357
    %v1359 = vmul.f32 %v1236, 1.442695
    %v1360 = vpow.pop %v1359
    %v1361 = vmul.f32 %v1237, 1.442695
    %v1362 = vpow.pop %v1361
    %v1363 = vmul.f32 %v1238, 1.442695
    %v1364 = vpow.pop %v1363
    %v1365 = vmul.f32 %v1239, 1.442695
    %v1366 = vpow.pop %v1365
    %v1367 = vmul.f32 %v1240, 1.442695
    %v1368 = vpow.pop %v1367
    %1369 = vadd.xlane.f32.xlu0 %v1242
    %v1370 = vpop.xlane.xlu0 %1369
    %1371 = vadd.xlane.f32.xlu0 %v1244
    %v1372 = vpop.xlane.xlu0 %1371
    %1373 = vadd.xlane.f32.xlu0 %v1246
    %v1374 = vpop.xlane.xlu0 %1373
    %1375 = vadd.xlane.f32.xlu0 %v1248
    %v1376 = vpop.xlane.xlu0 %1375
    %1377 = vadd.xlane.f32.xlu0 %v1250
    %v1378 = vpop.xlane.xlu0 %1377
    %1379 = vadd.xlane.f32.xlu0 %v1252
    %v1380 = vpop.xlane.xlu0 %1379
    %1381 = vadd.xlane.f32.xlu0 %v1254
    %v1382 = vpop.xlane.xlu0 %1381
    %1383 = vadd.xlane.f32.xlu0 %v1256
    %v1384 = vpop.xlane.xlu0 %1383
    %1385 = vadd.xlane.f32.xlu0 %v1258
    %v1386 = vpop.xlane.xlu0 %1385
    %1387 = vadd.xlane.f32.xlu0 %v1260
    %v1388 = vpop.xlane.xlu0 %1387
    %1389 = vadd.xlane.f32.xlu0 %v1262
    %v1390 = vpop.xlane.xlu0 %1389
    %1391 = vadd.xlane.f32.xlu0 %v1264
    %v1392 = vpop.xlane.xlu0 %1391
    %1393 = vadd.xlane.f32.xlu0 %v1266
    %v1394 = vpop.xlane.xlu0 %1393
    %1395 = vadd.xlane.f32.xlu0 %v1268
    %v1396 = vpop.xlane.xlu0 %1395
    %1397 = vadd.xlane.f32.xlu0 %v1270
    %v1398 = vpop.xlane.xlu0 %1397
    %1399 = vadd.xlane.f32.xlu0 %v1272
    %v1400 = vpop.xlane.xlu0 %1399
    %1401 = vadd.xlane.f32.xlu0 %v1274
    %v1402 = vpop.xlane.xlu0 %1401
    %1403 = vadd.xlane.f32.xlu0 %v1276
    %v1404 = vpop.xlane.xlu0 %1403
    %1405 = vadd.xlane.f32.xlu0 %v1278
    %v1406 = vpop.xlane.xlu0 %1405
    %1407 = vadd.xlane.f32.xlu0 %v1280
    %v1408 = vpop.xlane.xlu0 %1407
    %1409 = vadd.xlane.f32.xlu0 %v1282
    %v1410 = vpop.xlane.xlu0 %1409
    %1411 = vadd.xlane.f32.xlu0 %v1284
    %v1412 = vpop.xlane.xlu0 %1411
    %1413 = vadd.xlane.f32.xlu0 %v1286
    %v1414 = vpop.xlane.xlu0 %1413
    %1415 = vadd.xlane.f32.xlu0 %v1288
    %v1416 = vpop.xlane.xlu0 %1415
    %1417 = vadd.xlane.f32.xlu0 %v1290
    %v1418 = vpop.xlane.xlu0 %1417
    %1419 = vadd.xlane.f32.xlu0 %v1292
    %v1420 = vpop.xlane.xlu0 %1419
    %1421 = vadd.xlane.f32.xlu0 %v1294
    %v1422 = vpop.xlane.xlu0 %1421
    %1423 = vadd.xlane.f32.xlu0 %v1296
    %v1424 = vpop.xlane.xlu0 %1423
    %1425 = vadd.xlane.f32.xlu0 %v1298
    %v1426 = vpop.xlane.xlu0 %1425
    %1427 = vadd.xlane.f32.xlu0 %v1300
    %v1428 = vpop.xlane.xlu0 %1427
    %1429 = vadd.xlane.f32.xlu0 %v1302
    %v1430 = vpop.xlane.xlu0 %1429
    %1431 = vadd.xlane.f32.xlu0 %v1304
    %v1432 = vpop.xlane.xlu0 %1431
    %1433 = vadd.xlane.f32.xlu0 %v1306
    %v1434 = vpop.xlane.xlu0 %1433
    %1435 = vadd.xlane.f32.xlu0 %v1308
    %v1436 = vpop.xlane.xlu0 %1435
    %1437 = vadd.xlane.f32.xlu0 %v1310
    %v1438 = vpop.xlane.xlu0 %1437
    %1439 = vadd.xlane.f32.xlu0 %v1312
    %v1440 = vpop.xlane.xlu0 %1439
    %1441 = vadd.xlane.f32.xlu0 %v1314
    %v1442 = vpop.xlane.xlu0 %1441
    %1443 = vadd.xlane.f32.xlu0 %v1316
    %v1444 = vpop.xlane.xlu0 %1443
    %1445 = vadd.xlane.f32.xlu0 %v1318
    %v1446 = vpop.xlane.xlu0 %1445
    %1447 = vadd.xlane.f32.xlu0 %v1320
    %v1448 = vpop.xlane.xlu0 %1447
    %1449 = vadd.xlane.f32.xlu0 %v1322
    %v1450 = vpop.xlane.xlu0 %1449
    %1451 = vadd.xlane.f32.xlu0 %v1324
    %v1452 = vpop.xlane.xlu0 %1451
    %1453 = vadd.xlane.f32.xlu0 %v1326
    %v1454 = vpop.xlane.xlu0 %1453
    %1455 = vadd.xlane.f32.xlu0 %v1328
    %v1456 = vpop.xlane.xlu0 %1455
    %1457 = vadd.xlane.f32.xlu0 %v1330
    %v1458 = vpop.xlane.xlu0 %1457
    %1459 = vadd.xlane.f32.xlu0 %v1332
    %v1460 = vpop.xlane.xlu0 %1459
    %1461 = vadd.xlane.f32.xlu0 %v1334
    %v1462 = vpop.xlane.xlu0 %1461
    %1463 = vadd.xlane.f32.xlu0 %v1336
    %v1464 = vpop.xlane.xlu0 %1463
    %1465 = vadd.xlane.f32.xlu0 %v1338
    %v1466 = vpop.xlane.xlu0 %1465
    %1467 = vadd.xlane.f32.xlu0 %v1340
    %v1468 = vpop.xlane.xlu0 %1467
    %1469 = vadd.xlane.f32.xlu0 %v1342
    %v1470 = vpop.xlane.xlu0 %1469
    %1471 = vadd.xlane.f32.xlu0 %v1344
    %v1472 = vpop.xlane.xlu0 %1471
    %1473 = vadd.xlane.f32.xlu0 %v1346
    %v1474 = vpop.xlane.xlu0 %1473
    %1475 = vadd.xlane.f32.xlu0 %v1348
    %v1476 = vpop.xlane.xlu0 %1475
    %1477 = vadd.xlane.f32.xlu0 %v1350
    %v1478 = vpop.xlane.xlu0 %1477
    %1479 = vadd.xlane.f32.xlu0 %v1352
    %v1480 = vpop.xlane.xlu0 %1479
    %1481 = vadd.xlane.f32.xlu0 %v1354
    %v1482 = vpop.xlane.xlu0 %1481
    %1483 = vadd.xlane.f32.xlu0 %v1356
    %v1484 = vpop.xlane.xlu0 %1483
    %1485 = vadd.xlane.f32.xlu0 %v1358
    %v1486 = vpop.xlane.xlu0 %1485
    %1487 = vadd.xlane.f32.xlu0 %v1360
    %v1488 = vpop.xlane.xlu0 %1487
    %1489 = vadd.xlane.f32.xlu0 %v1362
    %v1490 = vpop.xlane.xlu0 %1489
    %1491 = vadd.xlane.f32.xlu0 %v1364
    %v1492 = vpop.xlane.xlu0 %1491
    %1493 = vadd.xlane.f32.xlu0 %v1366
    %v1494 = vpop.xlane.xlu0 %1493
    %1495 = vadd.xlane.f32.xlu0 %v1368
    %v1496 = vpop.xlane.xlu0 %1495
    %v1497 = vrcp.pop %v1370
    %v1498 = vmul.f32 %v1370, %v1497
    %v1499 = vsub.f32 1.0, %v1498
    %v1500 = vmul.f32 %v1497, %v1499
    %v1501 = vadd.f32 %v1497, %v1500
    %vm1502 = vweird.f32 %v1370
    %vm1503 = vweird.f32 %v1497
    %vm1504 = vmor %vm1502, %vm1503
    %v1505 = vsel %vm1504, %v1497, %v1501
    %v1506 = vand.u32 2147483647, %v1370
    %vm1507 = vcmp.eq.f32.partialorder %v1506, 8.507059e+37
    %v1508 = vand.u32 %v1370, 2147483648
    %v1509 = vor.u32 1.1754944e-38, %v1508
    %v1510 = vsel %vm1507, %v1509, %v1505
    %v1511 = vmul.f32 %v1242, %v1510
    %v1512 = vrcp.pop %v1372
    %v1513 = vmul.f32 %v1372, %v1512
    %v1514 = vsub.f32 1.0, %v1513
    %v1515 = vmul.f32 %v1512, %v1514
    %v1516 = vadd.f32 %v1512, %v1515
    %vm1517 = vweird.f32 %v1372
    %vm1518 = vweird.f32 %v1512
    %vm1519 = vmor %vm1517, %vm1518
    %v1520 = vsel %vm1519, %v1512, %v1516
    %v1521 = vand.u32 2147483647, %v1372
    %vm1522 = vcmp.eq.f32.partialorder %v1521, 8.507059e+37
    %v1523 = vand.u32 %v1372, 2147483648
    %v1524 = vor.u32 1.1754944e-38, %v1523
    %v1525 = vsel %vm1522, %v1524, %v1520
    %v1526 = vmul.f32 %v1244, %v1525
    %v1527 = vrcp.pop %v1374
    %v1528 = vmul.f32 %v1374, %v1527
    %v1529 = vsub.f32 1.0, %v1528
    %v1530 = vmul.f32 %v1527, %v1529
    %v1531 = vadd.f32 %v1527, %v1530
    %vm1532 = vweird.f32 %v1374
    %vm1533 = vweird.f32 %v1527
    %vm1534 = vmor %vm1532, %vm1533
    %v1535 = vsel %vm1534, %v1527, %v1531
    %v1536 = vand.u32 2147483647, %v1374
    %vm1537 = vcmp.eq.f32.partialorder %v1536, 8.507059e+37
    %v1538 = vand.u32 %v1374, 2147483648
    %v1539 = vor.u32 1.1754944e-38, %v1538
    %v1540 = vsel %vm1537, %v1539, %v1535
    %v1541 = vmul.f32 %v1246, %v1540
    %v1542 = vrcp.pop %v1376
    %v1543 = vmul.f32 %v1376, %v1542
    %v1544 = vsub.f32 1.0, %v1543
    %v1545 = vmul.f32 %v1542, %v1544
    %v1546 = vadd.f32 %v1542, %v1545
    %vm1547 = vweird.f32 %v1376
    %vm1548 = vweird.f32 %v1542
    %vm1549 = vmor %vm1547, %vm1548
    %v1550 = vsel %vm1549, %v1542, %v1546
    %v1551 = vand.u32 2147483647, %v1376
    %vm1552 = vcmp.eq.f32.partialorder %v1551, 8.507059e+37
    %v1553 = vand.u32 %v1376, 2147483648
    %v1554 = vor.u32 1.1754944e-38, %v1553
    %v1555 = vsel %vm1552, %v1554, %v1550
    %v1556 = vmul.f32 %v1248, %v1555
    %v1557 = vrcp.pop %v1378
    %v1558 = vmul.f32 %v1378, %v1557
    %v1559 = vsub.f32 1.0, %v1558
    %v1560 = vmul.f32 %v1557, %v1559
    %v1561 = vadd.f32 %v1557, %v1560
    %vm1562 = vweird.f32 %v1378
    %vm1563 = vweird.f32 %v1557
    %vm1564 = vmor %vm1562, %vm1563
    %v1565 = vsel %vm1564, %v1557, %v1561
    %v1566 = vand.u32 2147483647, %v1378
    %vm1567 = vcmp.eq.f32.partialorder %v1566, 8.507059e+37
    %v1568 = vand.u32 %v1378, 2147483648
    %v1569 = vor.u32 1.1754944e-38, %v1568
    %v1570 = vsel %vm1567, %v1569, %v1565
    %v1571 = vmul.f32 %v1250, %v1570
    %v1572 = vrcp.pop %v1380
    %v1573 = vmul.f32 %v1380, %v1572
    %v1574 = vsub.f32 1.0, %v1573
    %v1575 = vmul.f32 %v1572, %v1574
    %v1576 = vadd.f32 %v1572, %v1575
    %vm1577 = vweird.f32 %v1380
    %vm1578 = vweird.f32 %v1572
    %vm1579 = vmor %vm1577, %vm1578
    %v1580 = vsel %vm1579, %v1572, %v1576
    %v1581 = vand.u32 2147483647, %v1380
    %vm1582 = vcmp.eq.f32.partialorder %v1581, 8.507059e+37
    %v1583 = vand.u32 %v1380, 2147483648
    %v1584 = vor.u32 1.1754944e-38, %v1583
    %v1585 = vsel %vm1582, %v1584, %v1580
    %v1586 = vmul.f32 %v1252, %v1585
    %v1587 = vrcp.pop %v1382
    %v1588 = vmul.f32 %v1382, %v1587
    %v1589 = vsub.f32 1.0, %v1588
    %v1590 = vmul.f32 %v1587, %v1589
    %v1591 = vadd.f32 %v1587, %v1590
    %vm1592 = vweird.f32 %v1382
    %vm1593 = vweird.f32 %v1587
    %vm1594 = vmor %vm1592, %vm1593
    %v1595 = vsel %vm1594, %v1587, %v1591
    %v1596 = vand.u32 2147483647, %v1382
    %vm1597 = vcmp.eq.f32.partialorder %v1596, 8.507059e+37
    %v1598 = vand.u32 %v1382, 2147483648
    %v1599 = vor.u32 1.1754944e-38, %v1598
    %v1600 = vsel %vm1597, %v1599, %v1595
    %v1601 = vmul.f32 %v1254, %v1600
    %v1602 = vrcp.pop %v1384
    %v1603 = vmul.f32 %v1384, %v1602
    %v1604 = vsub.f32 1.0, %v1603
    %v1605 = vmul.f32 %v1602, %v1604
    %v1606 = vadd.f32 %v1602, %v1605
    %vm1607 = vweird.f32 %v1384
    %vm1608 = vweird.f32 %v1602
    %vm1609 = vmor %vm1607, %vm1608
    %v1610 = vsel %vm1609, %v1602, %v1606
    %v1611 = vand.u32 2147483647, %v1384
    %vm1612 = vcmp.eq.f32.partialorder %v1611, 8.507059e+37
    %v1613 = vand.u32 %v1384, 2147483648
    %v1614 = vor.u32 1.1754944e-38, %v1613
    %v1615 = vsel %vm1612, %v1614, %v1610
    %v1616 = vmul.f32 %v1256, %v1615
    %v1617 = vrcp.pop %v1386
    %v1618 = vmul.f32 %v1386, %v1617
    %v1619 = vsub.f32 1.0, %v1618
    %v1620 = vmul.f32 %v1617, %v1619
    %v1621 = vadd.f32 %v1617, %v1620
    %vm1622 = vweird.f32 %v1386
    %vm1623 = vweird.f32 %v1617
    %vm1624 = vmor %vm1622, %vm1623
    %v1625 = vsel %vm1624, %v1617, %v1621
    %v1626 = vand.u32 2147483647, %v1386
    %vm1627 = vcmp.eq.f32.partialorder %v1626, 8.507059e+37
    %v1628 = vand.u32 %v1386, 2147483648
    %v1629 = vor.u32 1.1754944e-38, %v1628
    %v1630 = vsel %vm1627, %v1629, %v1625
    %v1631 = vmul.f32 %v1258, %v1630
    %v1632 = vrcp.pop %v1388
    %v1633 = vmul.f32 %v1388, %v1632
    %v1634 = vsub.f32 1.0, %v1633
    %v1635 = vmul.f32 %v1632, %v1634
    %v1636 = vadd.f32 %v1632, %v1635
    %vm1637 = vweird.f32 %v1388
    %vm1638 = vweird.f32 %v1632
    %vm1639 = vmor %vm1637, %vm1638
    %v1640 = vsel %vm1639, %v1632, %v1636
    %v1641 = vand.u32 2147483647, %v1388
    %vm1642 = vcmp.eq.f32.partialorder %v1641, 8.507059e+37
    %v1643 = vand.u32 %v1388, 2147483648
    %v1644 = vor.u32 1.1754944e-38, %v1643
    %v1645 = vsel %vm1642, %v1644, %v1640
    %v1646 = vmul.f32 %v1260, %v1645
    %v1647 = vrcp.pop %v1390
    %v1648 = vmul.f32 %v1390, %v1647
    %v1649 = vsub.f32 1.0, %v1648
    %v1650 = vmul.f32 %v1647, %v1649
    %v1651 = vadd.f32 %v1647, %v1650
    %vm1652 = vweird.f32 %v1390
    %vm1653 = vweird.f32 %v1647
    %vm1654 = vmor %vm1652, %vm1653
    %v1655 = vsel %vm1654, %v1647, %v1651
    %v1656 = vand.u32 2147483647, %v1390
    %vm1657 = vcmp.eq.f32.partialorder %v1656, 8.507059e+37
    %v1658 = vand.u32 %v1390, 2147483648
    %v1659 = vor.u32 1.1754944e-38, %v1658
    %v1660 = vsel %vm1657, %v1659, %v1655
    %v1661 = vmul.f32 %v1262, %v1660
    %v1662 = vrcp.pop %v1392
    %v1663 = vmul.f32 %v1392, %v1662
    %v1664 = vsub.f32 1.0, %v1663
    %v1665 = vmul.f32 %v1662, %v1664
    %v1666 = vadd.f32 %v1662, %v1665
    %vm1667 = vweird.f32 %v1392
    %vm1668 = vweird.f32 %v1662
    %vm1669 = vmor %vm1667, %vm1668
    %v1670 = vsel %vm1669, %v1662, %v1666
    %v1671 = vand.u32 2147483647, %v1392
    %vm1672 = vcmp.eq.f32.partialorder %v1671, 8.507059e+37
    %v1673 = vand.u32 %v1392, 2147483648
    %v1674 = vor.u32 1.1754944e-38, %v1673
    %v1675 = vsel %vm1672, %v1674, %v1670
    %v1676 = vmul.f32 %v1264, %v1675
    %v1677 = vrcp.pop %v1394
    %v1678 = vmul.f32 %v1394, %v1677
    %v1679 = vsub.f32 1.0, %v1678
    %v1680 = vmul.f32 %v1677, %v1679
    %v1681 = vadd.f32 %v1677, %v1680
    %vm1682 = vweird.f32 %v1394
    %vm1683 = vweird.f32 %v1677
    %vm1684 = vmor %vm1682, %vm1683
    %v1685 = vsel %vm1684, %v1677, %v1681
    %v1686 = vand.u32 2147483647, %v1394
    %vm1687 = vcmp.eq.f32.partialorder %v1686, 8.507059e+37
    %v1688 = vand.u32 %v1394, 2147483648
    %v1689 = vor.u32 1.1754944e-38, %v1688
    %v1690 = vsel %vm1687, %v1689, %v1685
    %v1691 = vmul.f32 %v1266, %v1690
    %v1692 = vrcp.pop %v1396
    %v1693 = vmul.f32 %v1396, %v1692
    %v1694 = vsub.f32 1.0, %v1693
    %v1695 = vmul.f32 %v1692, %v1694
    %v1696 = vadd.f32 %v1692, %v1695
    %vm1697 = vweird.f32 %v1396
    %vm1698 = vweird.f32 %v1692
    %vm1699 = vmor %vm1697, %vm1698
    %v1700 = vsel %vm1699, %v1692, %v1696
    %v1701 = vand.u32 2147483647, %v1396
    %vm1702 = vcmp.eq.f32.partialorder %v1701, 8.507059e+37
    %v1703 = vand.u32 %v1396, 2147483648
    %v1704 = vor.u32 1.1754944e-38, %v1703
    %v1705 = vsel %vm1702, %v1704, %v1700
    %v1706 = vmul.f32 %v1268, %v1705
    %v1707 = vrcp.pop %v1398
    %v1708 = vmul.f32 %v1398, %v1707
    %v1709 = vsub.f32 1.0, %v1708
    %v1710 = vmul.f32 %v1707, %v1709
    %v1711 = vadd.f32 %v1707, %v1710
    %vm1712 = vweird.f32 %v1398
    %vm1713 = vweird.f32 %v1707
    %vm1714 = vmor %vm1712, %vm1713
    %v1715 = vsel %vm1714, %v1707, %v1711
    %v1716 = vand.u32 2147483647, %v1398
    %vm1717 = vcmp.eq.f32.partialorder %v1716, 8.507059e+37
    %v1718 = vand.u32 %v1398, 2147483648
    %v1719 = vor.u32 1.1754944e-38, %v1718
    %v1720 = vsel %vm1717, %v1719, %v1715
    %v1721 = vmul.f32 %v1270, %v1720
    %v1722 = vrcp.pop %v1400
    %v1723 = vmul.f32 %v1400, %v1722
    %v1724 = vsub.f32 1.0, %v1723
    %v1725 = vmul.f32 %v1722, %v1724
    %v1726 = vadd.f32 %v1722, %v1725
    %vm1727 = vweird.f32 %v1400
    %vm1728 = vweird.f32 %v1722
    %vm1729 = vmor %vm1727, %vm1728
    %v1730 = vsel %vm1729, %v1722, %v1726
    %v1731 = vand.u32 2147483647, %v1400
    %vm1732 = vcmp.eq.f32.partialorder %v1731, 8.507059e+37
    %v1733 = vand.u32 %v1400, 2147483648
    %v1734 = vor.u32 1.1754944e-38, %v1733
    %v1735 = vsel %vm1732, %v1734, %v1730
    %v1736 = vmul.f32 %v1272, %v1735
    %v1737 = vrcp.pop %v1402
    %v1738 = vmul.f32 %v1402, %v1737
    %v1739 = vsub.f32 1.0, %v1738
    %v1740 = vmul.f32 %v1737, %v1739
    %v1741 = vadd.f32 %v1737, %v1740
    %vm1742 = vweird.f32 %v1402
    %vm1743 = vweird.f32 %v1737
    %vm1744 = vmor %vm1742, %vm1743
    %v1745 = vsel %vm1744, %v1737, %v1741
    %v1746 = vand.u32 2147483647, %v1402
    %vm1747 = vcmp.eq.f32.partialorder %v1746, 8.507059e+37
    %v1748 = vand.u32 %v1402, 2147483648
    %v1749 = vor.u32 1.1754944e-38, %v1748
    %v1750 = vsel %vm1747, %v1749, %v1745
    %v1751 = vmul.f32 %v1274, %v1750
    %v1752 = vrcp.pop %v1404
    %v1753 = vmul.f32 %v1404, %v1752
    %v1754 = vsub.f32 1.0, %v1753
    %v1755 = vmul.f32 %v1752, %v1754
    %v1756 = vadd.f32 %v1752, %v1755
    %vm1757 = vweird.f32 %v1404
    %vm1758 = vweird.f32 %v1752
    %vm1759 = vmor %vm1757, %vm1758
    %v1760 = vsel %vm1759, %v1752, %v1756
    %v1761 = vand.u32 2147483647, %v1404
    %vm1762 = vcmp.eq.f32.partialorder %v1761, 8.507059e+37
    %v1763 = vand.u32 %v1404, 2147483648
    %v1764 = vor.u32 1.1754944e-38, %v1763
    %v1765 = vsel %vm1762, %v1764, %v1760
    %v1766 = vmul.f32 %v1276, %v1765
    %v1767 = vrcp.pop %v1406
    %v1768 = vmul.f32 %v1406, %v1767
    %v1769 = vsub.f32 1.0, %v1768
    %v1770 = vmul.f32 %v1767, %v1769
    %v1771 = vadd.f32 %v1767, %v1770
    %vm1772 = vweird.f32 %v1406
    %vm1773 = vweird.f32 %v1767
    %vm1774 = vmor %vm1772, %vm1773
    %v1775 = vsel %vm1774, %v1767, %v1771
    %v1776 = vand.u32 2147483647, %v1406
    %vm1777 = vcmp.eq.f32.partialorder %v1776, 8.507059e+37
    %v1778 = vand.u32 %v1406, 2147483648
    %v1779 = vor.u32 1.1754944e-38, %v1778
    %v1780 = vsel %vm1777, %v1779, %v1775
    %v1781 = vmul.f32 %v1278, %v1780
    %v1782 = vrcp.pop %v1408
    %v1783 = vmul.f32 %v1408, %v1782
    %v1784 = vsub.f32 1.0, %v1783
    %v1785 = vmul.f32 %v1782, %v1784
    %v1786 = vadd.f32 %v1782, %v1785
    %vm1787 = vweird.f32 %v1408
    %vm1788 = vweird.f32 %v1782
    %vm1789 = vmor %vm1787, %vm1788
    %v1790 = vsel %vm1789, %v1782, %v1786
    %v1791 = vand.u32 2147483647, %v1408
    %vm1792 = vcmp.eq.f32.partialorder %v1791, 8.507059e+37
    %v1793 = vand.u32 %v1408, 2147483648
    %v1794 = vor.u32 1.1754944e-38, %v1793
    %v1795 = vsel %vm1792, %v1794, %v1790
    %v1796 = vmul.f32 %v1280, %v1795
    %v1797 = vrcp.pop %v1410
    %v1798 = vmul.f32 %v1410, %v1797
    %v1799 = vsub.f32 1.0, %v1798
    %v1800 = vmul.f32 %v1797, %v1799
    %v1801 = vadd.f32 %v1797, %v1800
    %vm1802 = vweird.f32 %v1410
    %vm1803 = vweird.f32 %v1797
    %vm1804 = vmor %vm1802, %vm1803
    %v1805 = vsel %vm1804, %v1797, %v1801
    %v1806 = vand.u32 2147483647, %v1410
    %vm1807 = vcmp.eq.f32.partialorder %v1806, 8.507059e+37
    %v1808 = vand.u32 %v1410, 2147483648
    %v1809 = vor.u32 1.1754944e-38, %v1808
    %v1810 = vsel %vm1807, %v1809, %v1805
    %v1811 = vmul.f32 %v1282, %v1810
    %v1812 = vrcp.pop %v1412
    %v1813 = vmul.f32 %v1412, %v1812
    %v1814 = vsub.f32 1.0, %v1813
    %v1815 = vmul.f32 %v1812, %v1814
    %v1816 = vadd.f32 %v1812, %v1815
    %vm1817 = vweird.f32 %v1412
    %vm1818 = vweird.f32 %v1812
    %vm1819 = vmor %vm1817, %vm1818
    %v1820 = vsel %vm1819, %v1812, %v1816
    %v1821 = vand.u32 2147483647, %v1412
    %vm1822 = vcmp.eq.f32.partialorder %v1821, 8.507059e+37
    %v1823 = vand.u32 %v1412, 2147483648
    %v1824 = vor.u32 1.1754944e-38, %v1823
    %v1825 = vsel %vm1822, %v1824, %v1820
    %v1826 = vmul.f32 %v1284, %v1825
    %v1827 = vrcp.pop %v1414
    %v1828 = vmul.f32 %v1414, %v1827
    %v1829 = vsub.f32 1.0, %v1828
    %v1830 = vmul.f32 %v1827, %v1829
    %v1831 = vadd.f32 %v1827, %v1830
    %vm1832 = vweird.f32 %v1414
    %vm1833 = vweird.f32 %v1827
    %vm1834 = vmor %vm1832, %vm1833
    %v1835 = vsel %vm1834, %v1827, %v1831
    %v1836 = vand.u32 2147483647, %v1414
    %vm1837 = vcmp.eq.f32.partialorder %v1836, 8.507059e+37
    %v1838 = vand.u32 %v1414, 2147483648
    %v1839 = vor.u32 1.1754944e-38, %v1838
    %v1840 = vsel %vm1837, %v1839, %v1835
    %v1841 = vmul.f32 %v1286, %v1840
    %v1842 = vrcp.pop %v1416
    %v1843 = vmul.f32 %v1416, %v1842
    %v1844 = vsub.f32 1.0, %v1843
    %v1845 = vmul.f32 %v1842, %v1844
    %v1846 = vadd.f32 %v1842, %v1845
    %vm1847 = vweird.f32 %v1416
    %vm1848 = vweird.f32 %v1842
    %vm1849 = vmor %vm1847, %vm1848
    %v1850 = vsel %vm1849, %v1842, %v1846
    %v1851 = vand.u32 2147483647, %v1416
    %vm1852 = vcmp.eq.f32.partialorder %v1851, 8.507059e+37
    %v1853 = vand.u32 %v1416, 2147483648
    %v1854 = vor.u32 1.1754944e-38, %v1853
    %v1855 = vsel %vm1852, %v1854, %v1850
    %v1856 = vmul.f32 %v1288, %v1855
    %v1857 = vrcp.pop %v1418
    %v1858 = vmul.f32 %v1418, %v1857
    %v1859 = vsub.f32 1.0, %v1858
    %v1860 = vmul.f32 %v1857, %v1859
    %v1861 = vadd.f32 %v1857, %v1860
    %vm1862 = vweird.f32 %v1418
    %vm1863 = vweird.f32 %v1857
    %vm1864 = vmor %vm1862, %vm1863
    %v1865 = vsel %vm1864, %v1857, %v1861
    %v1866 = vand.u32 2147483647, %v1418
    %vm1867 = vcmp.eq.f32.partialorder %v1866, 8.507059e+37
    %v1868 = vand.u32 %v1418, 2147483648
    %v1869 = vor.u32 1.1754944e-38, %v1868
    %v1870 = vsel %vm1867, %v1869, %v1865
    %v1871 = vmul.f32 %v1290, %v1870
    %v1872 = vrcp.pop %v1420
    %v1873 = vmul.f32 %v1420, %v1872
    %v1874 = vsub.f32 1.0, %v1873
    %v1875 = vmul.f32 %v1872, %v1874
    %v1876 = vadd.f32 %v1872, %v1875
    %vm1877 = vweird.f32 %v1420
    %vm1878 = vweird.f32 %v1872
    %vm1879 = vmor %vm1877, %vm1878
    %v1880 = vsel %vm1879, %v1872, %v1876
    %v1881 = vand.u32 2147483647, %v1420
    %vm1882 = vcmp.eq.f32.partialorder %v1881, 8.507059e+37
    %v1883 = vand.u32 %v1420, 2147483648
    %v1884 = vor.u32 1.1754944e-38, %v1883
    %v1885 = vsel %vm1882, %v1884, %v1880
    %v1886 = vmul.f32 %v1292, %v1885
    %v1887 = vrcp.pop %v1422
    %v1888 = vmul.f32 %v1422, %v1887
    %v1889 = vsub.f32 1.0, %v1888
    %v1890 = vmul.f32 %v1887, %v1889
    %v1891 = vadd.f32 %v1887, %v1890
    %vm1892 = vweird.f32 %v1422
    %vm1893 = vweird.f32 %v1887
    %vm1894 = vmor %vm1892, %vm1893
    %v1895 = vsel %vm1894, %v1887, %v1891
    %v1896 = vand.u32 2147483647, %v1422
    %vm1897 = vcmp.eq.f32.partialorder %v1896, 8.507059e+37
    %v1898 = vand.u32 %v1422, 2147483648
    %v1899 = vor.u32 1.1754944e-38, %v1898
    %v1900 = vsel %vm1897, %v1899, %v1895
    %v1901 = vmul.f32 %v1294, %v1900
    %v1902 = vrcp.pop %v1424
    %v1903 = vmul.f32 %v1424, %v1902
    %v1904 = vsub.f32 1.0, %v1903
    %v1905 = vmul.f32 %v1902, %v1904
    %v1906 = vadd.f32 %v1902, %v1905
    %vm1907 = vweird.f32 %v1424
    %vm1908 = vweird.f32 %v1902
    %vm1909 = vmor %vm1907, %vm1908
    %v1910 = vsel %vm1909, %v1902, %v1906
    %v1911 = vand.u32 2147483647, %v1424
    %vm1912 = vcmp.eq.f32.partialorder %v1911, 8.507059e+37
    %v1913 = vand.u32 %v1424, 2147483648
    %v1914 = vor.u32 1.1754944e-38, %v1913
    %v1915 = vsel %vm1912, %v1914, %v1910
    %v1916 = vmul.f32 %v1296, %v1915
    %v1917 = vrcp.pop %v1426
    %v1918 = vmul.f32 %v1426, %v1917
    %v1919 = vsub.f32 1.0, %v1918
    %v1920 = vmul.f32 %v1917, %v1919
    %v1921 = vadd.f32 %v1917, %v1920
    %vm1922 = vweird.f32 %v1426
    %vm1923 = vweird.f32 %v1917
    %vm1924 = vmor %vm1922, %vm1923
    %v1925 = vsel %vm1924, %v1917, %v1921
    %v1926 = vand.u32 2147483647, %v1426
    %vm1927 = vcmp.eq.f32.partialorder %v1926, 8.507059e+37
    %v1928 = vand.u32 %v1426, 2147483648
    %v1929 = vor.u32 1.1754944e-38, %v1928
    %v1930 = vsel %vm1927, %v1929, %v1925
    %v1931 = vmul.f32 %v1298, %v1930
    %v1932 = vrcp.pop %v1428
    %v1933 = vmul.f32 %v1428, %v1932
    %v1934 = vsub.f32 1.0, %v1933
    %v1935 = vmul.f32 %v1932, %v1934
    %v1936 = vadd.f32 %v1932, %v1935
    %vm1937 = vweird.f32 %v1428
    %vm1938 = vweird.f32 %v1932
    %vm1939 = vmor %vm1937, %vm1938
    %v1940 = vsel %vm1939, %v1932, %v1936
    %v1941 = vand.u32 2147483647, %v1428
    %vm1942 = vcmp.eq.f32.partialorder %v1941, 8.507059e+37
    %v1943 = vand.u32 %v1428, 2147483648
    %v1944 = vor.u32 1.1754944e-38, %v1943
    %v1945 = vsel %vm1942, %v1944, %v1940
    %v1946 = vmul.f32 %v1300, %v1945
    %v1947 = vrcp.pop %v1430
    %v1948 = vmul.f32 %v1430, %v1947
    %v1949 = vsub.f32 1.0, %v1948
    %v1950 = vmul.f32 %v1947, %v1949
    %v1951 = vadd.f32 %v1947, %v1950
    %vm1952 = vweird.f32 %v1430
    %vm1953 = vweird.f32 %v1947
    %vm1954 = vmor %vm1952, %vm1953
    %v1955 = vsel %vm1954, %v1947, %v1951
    %v1956 = vand.u32 2147483647, %v1430
    %vm1957 = vcmp.eq.f32.partialorder %v1956, 8.507059e+37
    %v1958 = vand.u32 %v1430, 2147483648
    %v1959 = vor.u32 1.1754944e-38, %v1958
    %v1960 = vsel %vm1957, %v1959, %v1955
    %v1961 = vmul.f32 %v1302, %v1960
    %v1962 = vrcp.pop %v1432
    %v1963 = vmul.f32 %v1432, %v1962
    %v1964 = vsub.f32 1.0, %v1963
    %v1965 = vmul.f32 %v1962, %v1964
    %v1966 = vadd.f32 %v1962, %v1965
    %vm1967 = vweird.f32 %v1432
    %vm1968 = vweird.f32 %v1962
    %vm1969 = vmor %vm1967, %vm1968
    %v1970 = vsel %vm1969, %v1962, %v1966
    %v1971 = vand.u32 2147483647, %v1432
    %vm1972 = vcmp.eq.f32.partialorder %v1971, 8.507059e+37
    %v1973 = vand.u32 %v1432, 2147483648
    %v1974 = vor.u32 1.1754944e-38, %v1973
    %v1975 = vsel %vm1972, %v1974, %v1970
    %v1976 = vmul.f32 %v1304, %v1975
    %v1977 = vrcp.pop %v1434
    %v1978 = vmul.f32 %v1434, %v1977
    %v1979 = vsub.f32 1.0, %v1978
    %v1980 = vmul.f32 %v1977, %v1979
    %v1981 = vadd.f32 %v1977, %v1980
    %vm1982 = vweird.f32 %v1434
    %vm1983 = vweird.f32 %v1977
    %vm1984 = vmor %vm1982, %vm1983
    %v1985 = vsel %vm1984, %v1977, %v1981
    %v1986 = vand.u32 2147483647, %v1434
    %vm1987 = vcmp.eq.f32.partialorder %v1986, 8.507059e+37
    %v1988 = vand.u32 %v1434, 2147483648
    %v1989 = vor.u32 1.1754944e-38, %v1988
    %v1990 = vsel %vm1987, %v1989, %v1985
    %v1991 = vmul.f32 %v1306, %v1990
    %v1992 = vrcp.pop %v1436
    %v1993 = vmul.f32 %v1436, %v1992
    %v1994 = vsub.f32 1.0, %v1993
    %v1995 = vmul.f32 %v1992, %v1994
    %v1996 = vadd.f32 %v1992, %v1995
    %vm1997 = vweird.f32 %v1436
    %vm1998 = vweird.f32 %v1992
    %vm1999 = vmor %vm1997, %vm1998
    %v2000 = vsel %vm1999, %v1992, %v1996
    %v2001 = vand.u32 2147483647, %v1436
    %vm2002 = vcmp.eq.f32.partialorder %v2001, 8.507059e+37
    %v2003 = vand.u32 %v1436, 2147483648
    %v2004 = vor.u32 1.1754944e-38, %v2003
    %v2005 = vsel %vm2002, %v2004, %v2000
    %v2006 = vmul.f32 %v1308, %v2005
    %v2007 = vrcp.pop %v1438
    %v2008 = vmul.f32 %v1438, %v2007
    %v2009 = vsub.f32 1.0, %v2008
    %v2010 = vmul.f32 %v2007, %v2009
    %v2011 = vadd.f32 %v2007, %v2010
    %vm2012 = vweird.f32 %v1438
    %vm2013 = vweird.f32 %v2007
    %vm2014 = vmor %vm2012, %vm2013
    %v2015 = vsel %vm2014, %v2007, %v2011
    %v2016 = vand.u32 2147483647, %v1438
    %vm2017 = vcmp.eq.f32.partialorder %v2016, 8.507059e+37
    %v2018 = vand.u32 %v1438, 2147483648
    %v2019 = vor.u32 1.1754944e-38, %v2018
    %v2020 = vsel %vm2017, %v2019, %v2015
    %v2021 = vmul.f32 %v1310, %v2020
    %v2022 = vrcp.pop %v1440
    %v2023 = vmul.f32 %v1440, %v2022
    %v2024 = vsub.f32 1.0, %v2023
    %v2025 = vmul.f32 %v2022, %v2024
    %v2026 = vadd.f32 %v2022, %v2025
    %vm2027 = vweird.f32 %v1440
    %vm2028 = vweird.f32 %v2022
    %vm2029 = vmor %vm2027, %vm2028
    %v2030 = vsel %vm2029, %v2022, %v2026
    %v2031 = vand.u32 2147483647, %v1440
    %vm2032 = vcmp.eq.f32.partialorder %v2031, 8.507059e+37
    %v2033 = vand.u32 %v1440, 2147483648
    %v2034 = vor.u32 1.1754944e-38, %v2033
    %v2035 = vsel %vm2032, %v2034, %v2030
    %v2036 = vmul.f32 %v1312, %v2035
    %v2037 = vrcp.pop %v1442
    %v2038 = vmul.f32 %v1442, %v2037
    %v2039 = vsub.f32 1.0, %v2038
    %v2040 = vmul.f32 %v2037, %v2039
    %v2041 = vadd.f32 %v2037, %v2040
    %vm2042 = vweird.f32 %v1442
    %vm2043 = vweird.f32 %v2037
    %vm2044 = vmor %vm2042, %vm2043
    %v2045 = vsel %vm2044, %v2037, %v2041
    %v2046 = vand.u32 2147483647, %v1442
    %vm2047 = vcmp.eq.f32.partialorder %v2046, 8.507059e+37
    %v2048 = vand.u32 %v1442, 2147483648
    %v2049 = vor.u32 1.1754944e-38, %v2048
    %v2050 = vsel %vm2047, %v2049, %v2045
    %v2051 = vmul.f32 %v1314, %v2050
    %v2052 = vrcp.pop %v1444
    %v2053 = vmul.f32 %v1444, %v2052
    %v2054 = vsub.f32 1.0, %v2053
    %v2055 = vmul.f32 %v2052, %v2054
    %v2056 = vadd.f32 %v2052, %v2055
    %vm2057 = vweird.f32 %v1444
    %vm2058 = vweird.f32 %v2052
    %vm2059 = vmor %vm2057, %vm2058
    %v2060 = vsel %vm2059, %v2052, %v2056
    %v2061 = vand.u32 2147483647, %v1444
    %vm2062 = vcmp.eq.f32.partialorder %v2061, 8.507059e+37
    %v2063 = vand.u32 %v1444, 2147483648
    %v2064 = vor.u32 1.1754944e-38, %v2063
    %v2065 = vsel %vm2062, %v2064, %v2060
    %v2066 = vmul.f32 %v1316, %v2065
    %v2067 = vrcp.pop %v1446
    %v2068 = vmul.f32 %v1446, %v2067
    %v2069 = vsub.f32 1.0, %v2068
    %v2070 = vmul.f32 %v2067, %v2069
    %v2071 = vadd.f32 %v2067, %v2070
    %vm2072 = vweird.f32 %v1446
    %vm2073 = vweird.f32 %v2067
    %vm2074 = vmor %vm2072, %vm2073
    %v2075 = vsel %vm2074, %v2067, %v2071
    %v2076 = vand.u32 2147483647, %v1446
    %vm2077 = vcmp.eq.f32.partialorder %v2076, 8.507059e+37
    %v2078 = vand.u32 %v1446, 2147483648
    %v2079 = vor.u32 1.1754944e-38, %v2078
    %v2080 = vsel %vm2077, %v2079, %v2075
    %v2081 = vmul.f32 %v1318, %v2080
    %v2082 = vrcp.pop %v1448
    %v2083 = vmul.f32 %v1448, %v2082
    %v2084 = vsub.f32 1.0, %v2083
    %v2085 = vmul.f32 %v2082, %v2084
    %v2086 = vadd.f32 %v2082, %v2085
    %vm2087 = vweird.f32 %v1448
    %vm2088 = vweird.f32 %v2082
    %vm2089 = vmor %vm2087, %vm2088
    %v2090 = vsel %vm2089, %v2082, %v2086
    %v2091 = vand.u32 2147483647, %v1448
    %vm2092 = vcmp.eq.f32.partialorder %v2091, 8.507059e+37
    %v2093 = vand.u32 %v1448, 2147483648
    %v2094 = vor.u32 1.1754944e-38, %v2093
    %v2095 = vsel %vm2092, %v2094, %v2090
    %v2096 = vmul.f32 %v1320, %v2095
    %v2097 = vrcp.pop %v1450
    %v2098 = vmul.f32 %v1450, %v2097
    %v2099 = vsub.f32 1.0, %v2098
    %v2100 = vmul.f32 %v2097, %v2099
    %v2101 = vadd.f32 %v2097, %v2100
    %vm2102 = vweird.f32 %v1450
    %vm2103 = vweird.f32 %v2097
    %vm2104 = vmor %vm2102, %vm2103
    %v2105 = vsel %vm2104, %v2097, %v2101
    %v2106 = vand.u32 2147483647, %v1450
    %vm2107 = vcmp.eq.f32.partialorder %v2106, 8.507059e+37
    %v2108 = vand.u32 %v1450, 2147483648
    %v2109 = vor.u32 1.1754944e-38, %v2108
    %v2110 = vsel %vm2107, %v2109, %v2105
    %v2111 = vmul.f32 %v1322, %v2110
    %v2112 = vrcp.pop %v1452
    %v2113 = vmul.f32 %v1452, %v2112
    %v2114 = vsub.f32 1.0, %v2113
    %v2115 = vmul.f32 %v2112, %v2114
    %v2116 = vadd.f32 %v2112, %v2115
    %vm2117 = vweird.f32 %v1452
    %vm2118 = vweird.f32 %v2112
    %vm2119 = vmor %vm2117, %vm2118
    %v2120 = vsel %vm2119, %v2112, %v2116
    %v2121 = vand.u32 2147483647, %v1452
    %vm2122 = vcmp.eq.f32.partialorder %v2121, 8.507059e+37
    %v2123 = vand.u32 %v1452, 2147483648
    %v2124 = vor.u32 1.1754944e-38, %v2123
    %v2125 = vsel %vm2122, %v2124, %v2120
    %v2126 = vmul.f32 %v1324, %v2125
    %v2127 = vrcp.pop %v1454
    %v2128 = vmul.f32 %v1454, %v2127
    %v2129 = vsub.f32 1.0, %v2128
    %v2130 = vmul.f32 %v2127, %v2129
    %v2131 = vadd.f32 %v2127, %v2130
    %vm2132 = vweird.f32 %v1454
    %vm2133 = vweird.f32 %v2127
    %vm2134 = vmor %vm2132, %vm2133
    %v2135 = vsel %vm2134, %v2127, %v2131
    %v2136 = vand.u32 2147483647, %v1454
    %vm2137 = vcmp.eq.f32.partialorder %v2136, 8.507059e+37
    %v2138 = vand.u32 %v1454, 2147483648
    %v2139 = vor.u32 1.1754944e-38, %v2138
    %v2140 = vsel %vm2137, %v2139, %v2135
    %v2141 = vmul.f32 %v1326, %v2140
    %v2142 = vrcp.pop %v1456
    %v2143 = vmul.f32 %v1456, %v2142
    %v2144 = vsub.f32 1.0, %v2143
    %v2145 = vmul.f32 %v2142, %v2144
    %v2146 = vadd.f32 %v2142, %v2145
    %vm2147 = vweird.f32 %v1456
    %vm2148 = vweird.f32 %v2142
    %vm2149 = vmor %vm2147, %vm2148
    %v2150 = vsel %vm2149, %v2142, %v2146
    %v2151 = vand.u32 2147483647, %v1456
    %vm2152 = vcmp.eq.f32.partialorder %v2151, 8.507059e+37
    %v2153 = vand.u32 %v1456, 2147483648
    %v2154 = vor.u32 1.1754944e-38, %v2153
    %v2155 = vsel %vm2152, %v2154, %v2150
    %v2156 = vmul.f32 %v1328, %v2155
    %v2157 = vrcp.pop %v1458
    %v2158 = vmul.f32 %v1458, %v2157
    %v2159 = vsub.f32 1.0, %v2158
    %v2160 = vmul.f32 %v2157, %v2159
    %v2161 = vadd.f32 %v2157, %v2160
    %vm2162 = vweird.f32 %v1458
    %vm2163 = vweird.f32 %v2157
    %vm2164 = vmor %vm2162, %vm2163
    %v2165 = vsel %vm2164, %v2157, %v2161
    %v2166 = vand.u32 2147483647, %v1458
    %vm2167 = vcmp.eq.f32.partialorder %v2166, 8.507059e+37
    %v2168 = vand.u32 %v1458, 2147483648
    %v2169 = vor.u32 1.1754944e-38, %v2168
    %v2170 = vsel %vm2167, %v2169, %v2165
    %v2171 = vmul.f32 %v1330, %v2170
    %v2172 = vrcp.pop %v1460
    %v2173 = vmul.f32 %v1460, %v2172
    %v2174 = vsub.f32 1.0, %v2173
    %v2175 = vmul.f32 %v2172, %v2174
    %v2176 = vadd.f32 %v2172, %v2175
    %vm2177 = vweird.f32 %v1460
    %vm2178 = vweird.f32 %v2172
    %vm2179 = vmor %vm2177, %vm2178
    %v2180 = vsel %vm2179, %v2172, %v2176
    %v2181 = vand.u32 2147483647, %v1460
    %vm2182 = vcmp.eq.f32.partialorder %v2181, 8.507059e+37
    %v2183 = vand.u32 %v1460, 2147483648
    %v2184 = vor.u32 1.1754944e-38, %v2183
    %v2185 = vsel %vm2182, %v2184, %v2180
    %v2186 = vmul.f32 %v1332, %v2185
    %v2187 = vrcp.pop %v1462
    %v2188 = vmul.f32 %v1462, %v2187
    %v2189 = vsub.f32 1.0, %v2188
    %v2190 = vmul.f32 %v2187, %v2189
    %v2191 = vadd.f32 %v2187, %v2190
    %vm2192 = vweird.f32 %v1462
    %vm2193 = vweird.f32 %v2187
    %vm2194 = vmor %vm2192, %vm2193
    %v2195 = vsel %vm2194, %v2187, %v2191
    %v2196 = vand.u32 2147483647, %v1462
    %vm2197 = vcmp.eq.f32.partialorder %v2196, 8.507059e+37
    %v2198 = vand.u32 %v1462, 2147483648
    %v2199 = vor.u32 1.1754944e-38, %v2198
    %v2200 = vsel %vm2197, %v2199, %v2195
    %v2201 = vmul.f32 %v1334, %v2200
    %v2202 = vrcp.pop %v1464
    %v2203 = vmul.f32 %v1464, %v2202
    %v2204 = vsub.f32 1.0, %v2203
    %v2205 = vmul.f32 %v2202, %v2204
    %v2206 = vadd.f32 %v2202, %v2205
    %vm2207 = vweird.f32 %v1464
    %vm2208 = vweird.f32 %v2202
    %vm2209 = vmor %vm2207, %vm2208
    %v2210 = vsel %vm2209, %v2202, %v2206
    %v2211 = vand.u32 2147483647, %v1464
    %vm2212 = vcmp.eq.f32.partialorder %v2211, 8.507059e+37
    %v2213 = vand.u32 %v1464, 2147483648
    %v2214 = vor.u32 1.1754944e-38, %v2213
    %v2215 = vsel %vm2212, %v2214, %v2210
    %v2216 = vmul.f32 %v1336, %v2215
    %v2217 = vrcp.pop %v1466
    %v2218 = vmul.f32 %v1466, %v2217
    %v2219 = vsub.f32 1.0, %v2218
    %v2220 = vmul.f32 %v2217, %v2219
    %v2221 = vadd.f32 %v2217, %v2220
    %vm2222 = vweird.f32 %v1466
    %vm2223 = vweird.f32 %v2217
    %vm2224 = vmor %vm2222, %vm2223
    %v2225 = vsel %vm2224, %v2217, %v2221
    %v2226 = vand.u32 2147483647, %v1466
    %vm2227 = vcmp.eq.f32.partialorder %v2226, 8.507059e+37
    %v2228 = vand.u32 %v1466, 2147483648
    %v2229 = vor.u32 1.1754944e-38, %v2228
    %v2230 = vsel %vm2227, %v2229, %v2225
    %v2231 = vmul.f32 %v1338, %v2230
    %v2232 = vrcp.pop %v1468
    %v2233 = vmul.f32 %v1468, %v2232
    %v2234 = vsub.f32 1.0, %v2233
    %v2235 = vmul.f32 %v2232, %v2234
    %v2236 = vadd.f32 %v2232, %v2235
    %vm2237 = vweird.f32 %v1468
    %vm2238 = vweird.f32 %v2232
    %vm2239 = vmor %vm2237, %vm2238
    %v2240 = vsel %vm2239, %v2232, %v2236
    %v2241 = vand.u32 2147483647, %v1468
    %vm2242 = vcmp.eq.f32.partialorder %v2241, 8.507059e+37
    %v2243 = vand.u32 %v1468, 2147483648
    %v2244 = vor.u32 1.1754944e-38, %v2243
    %v2245 = vsel %vm2242, %v2244, %v2240
    %v2246 = vmul.f32 %v1340, %v2245
    %v2247 = vrcp.pop %v1470
    %v2248 = vmul.f32 %v1470, %v2247
    %v2249 = vsub.f32 1.0, %v2248
    %v2250 = vmul.f32 %v2247, %v2249
    %v2251 = vadd.f32 %v2247, %v2250
    %vm2252 = vweird.f32 %v1470
    %vm2253 = vweird.f32 %v2247
    %vm2254 = vmor %vm2252, %vm2253
    %v2255 = vsel %vm2254, %v2247, %v2251
    %v2256 = vand.u32 2147483647, %v1470
    %vm2257 = vcmp.eq.f32.partialorder %v2256, 8.507059e+37
    %v2258 = vand.u32 %v1470, 2147483648
    %v2259 = vor.u32 1.1754944e-38, %v2258
    %v2260 = vsel %vm2257, %v2259, %v2255
    %v2261 = vmul.f32 %v1342, %v2260
    %v2262 = vrcp.pop %v1472
    %v2263 = vmul.f32 %v1472, %v2262
    %v2264 = vsub.f32 1.0, %v2263
    %v2265 = vmul.f32 %v2262, %v2264
    %v2266 = vadd.f32 %v2262, %v2265
    %vm2267 = vweird.f32 %v1472
    %vm2268 = vweird.f32 %v2262
    %vm2269 = vmor %vm2267, %vm2268
    %v2270 = vsel %vm2269, %v2262, %v2266
    %v2271 = vand.u32 2147483647, %v1472
    %vm2272 = vcmp.eq.f32.partialorder %v2271, 8.507059e+37
    %v2273 = vand.u32 %v1472, 2147483648
    %v2274 = vor.u32 1.1754944e-38, %v2273
    %v2275 = vsel %vm2272, %v2274, %v2270
    %v2276 = vmul.f32 %v1344, %v2275
    %v2277 = vrcp.pop %v1474
    %v2278 = vmul.f32 %v1474, %v2277
    %v2279 = vsub.f32 1.0, %v2278
    %v2280 = vmul.f32 %v2277, %v2279
    %v2281 = vadd.f32 %v2277, %v2280
    %vm2282 = vweird.f32 %v1474
    %vm2283 = vweird.f32 %v2277
    %vm2284 = vmor %vm2282, %vm2283
    %v2285 = vsel %vm2284, %v2277, %v2281
    %v2286 = vand.u32 2147483647, %v1474
    %vm2287 = vcmp.eq.f32.partialorder %v2286, 8.507059e+37
    %v2288 = vand.u32 %v1474, 2147483648
    %v2289 = vor.u32 1.1754944e-38, %v2288
    %v2290 = vsel %vm2287, %v2289, %v2285
    %v2291 = vmul.f32 %v1346, %v2290
    %v2292 = vrcp.pop %v1476
    %v2293 = vmul.f32 %v1476, %v2292
    %v2294 = vsub.f32 1.0, %v2293
    %v2295 = vmul.f32 %v2292, %v2294
    %v2296 = vadd.f32 %v2292, %v2295
    %vm2297 = vweird.f32 %v1476
    %vm2298 = vweird.f32 %v2292
    %vm2299 = vmor %vm2297, %vm2298
    %v2300 = vsel %vm2299, %v2292, %v2296
    %v2301 = vand.u32 2147483647, %v1476
    %vm2302 = vcmp.eq.f32.partialorder %v2301, 8.507059e+37
    %v2303 = vand.u32 %v1476, 2147483648
    %v2304 = vor.u32 1.1754944e-38, %v2303
    %v2305 = vsel %vm2302, %v2304, %v2300
    %v2306 = vmul.f32 %v1348, %v2305
    %v2307 = vrcp.pop %v1478
    %v2308 = vmul.f32 %v1478, %v2307
    %v2309 = vsub.f32 1.0, %v2308
    %v2310 = vmul.f32 %v2307, %v2309
    %v2311 = vadd.f32 %v2307, %v2310
    %vm2312 = vweird.f32 %v1478
    %vm2313 = vweird.f32 %v2307
    %vm2314 = vmor %vm2312, %vm2313
    %v2315 = vsel %vm2314, %v2307, %v2311
    %v2316 = vand.u32 2147483647, %v1478
    %vm2317 = vcmp.eq.f32.partialorder %v2316, 8.507059e+37
    %v2318 = vand.u32 %v1478, 2147483648
    %v2319 = vor.u32 1.1754944e-38, %v2318
    %v2320 = vsel %vm2317, %v2319, %v2315
    %v2321 = vmul.f32 %v1350, %v2320
    %v2322 = vrcp.pop %v1480
    %v2323 = vmul.f32 %v1480, %v2322
    %v2324 = vsub.f32 1.0, %v2323
    %v2325 = vmul.f32 %v2322, %v2324
    %v2326 = vadd.f32 %v2322, %v2325
    %vm2327 = vweird.f32 %v1480
    %vm2328 = vweird.f32 %v2322
    %vm2329 = vmor %vm2327, %vm2328
    %v2330 = vsel %vm2329, %v2322, %v2326
    %v2331 = vand.u32 2147483647, %v1480
    %vm2332 = vcmp.eq.f32.partialorder %v2331, 8.507059e+37
    %v2333 = vand.u32 %v1480, 2147483648
    %v2334 = vor.u32 1.1754944e-38, %v2333
    %v2335 = vsel %vm2332, %v2334, %v2330
    %v2336 = vmul.f32 %v1352, %v2335
    %v2337 = vrcp.pop %v1482
    %v2338 = vmul.f32 %v1482, %v2337
    %v2339 = vsub.f32 1.0, %v2338
    %v2340 = vmul.f32 %v2337, %v2339
    %v2341 = vadd.f32 %v2337, %v2340
    %vm2342 = vweird.f32 %v1482
    %vm2343 = vweird.f32 %v2337
    %vm2344 = vmor %vm2342, %vm2343
    %v2345 = vsel %vm2344, %v2337, %v2341
    %v2346 = vand.u32 2147483647, %v1482
    %vm2347 = vcmp.eq.f32.partialorder %v2346, 8.507059e+37
    %v2348 = vand.u32 %v1482, 2147483648
    %v2349 = vor.u32 1.1754944e-38, %v2348
    %v2350 = vsel %vm2347, %v2349, %v2345
    %v2351 = vmul.f32 %v1354, %v2350
    %v2352 = vrcp.pop %v1484
    %v2353 = vmul.f32 %v1484, %v2352
    %v2354 = vsub.f32 1.0, %v2353
    %v2355 = vmul.f32 %v2352, %v2354
    %v2356 = vadd.f32 %v2352, %v2355
    %vm2357 = vweird.f32 %v1484
    %vm2358 = vweird.f32 %v2352
    %vm2359 = vmor %vm2357, %vm2358
    %v2360 = vsel %vm2359, %v2352, %v2356
    %v2361 = vand.u32 2147483647, %v1484
    %vm2362 = vcmp.eq.f32.partialorder %v2361, 8.507059e+37
    %v2363 = vand.u32 %v1484, 2147483648
    %v2364 = vor.u32 1.1754944e-38, %v2363
    %v2365 = vsel %vm2362, %v2364, %v2360
    %v2366 = vmul.f32 %v1356, %v2365
    %v2367 = vrcp.pop %v1486
    %v2368 = vmul.f32 %v1486, %v2367
    %v2369 = vsub.f32 1.0, %v2368
    %v2370 = vmul.f32 %v2367, %v2369
    %v2371 = vadd.f32 %v2367, %v2370
    %vm2372 = vweird.f32 %v1486
    %vm2373 = vweird.f32 %v2367
    %vm2374 = vmor %vm2372, %vm2373
    %v2375 = vsel %vm2374, %v2367, %v2371
    %v2376 = vand.u32 2147483647, %v1486
    %vm2377 = vcmp.eq.f32.partialorder %v2376, 8.507059e+37
    %v2378 = vand.u32 %v1486, 2147483648
    %v2379 = vor.u32 1.1754944e-38, %v2378
    %v2380 = vsel %vm2377, %v2379, %v2375
    %v2381 = vmul.f32 %v1358, %v2380
    %v2382 = vrcp.pop %v1488
    %v2383 = vmul.f32 %v1488, %v2382
    %v2384 = vsub.f32 1.0, %v2383
    %v2385 = vmul.f32 %v2382, %v2384
    %v2386 = vadd.f32 %v2382, %v2385
    %vm2387 = vweird.f32 %v1488
    %vm2388 = vweird.f32 %v2382
    %vm2389 = vmor %vm2387, %vm2388
    %v2390 = vsel %vm2389, %v2382, %v2386
    %v2391 = vand.u32 2147483647, %v1488
    %vm2392 = vcmp.eq.f32.partialorder %v2391, 8.507059e+37
    %v2393 = vand.u32 %v1488, 2147483648
    %v2394 = vor.u32 1.1754944e-38, %v2393
    %v2395 = vsel %vm2392, %v2394, %v2390
    %v2396 = vmul.f32 %v1360, %v2395
    %v2397 = vrcp.pop %v1490
    %v2398 = vmul.f32 %v1490, %v2397
    %v2399 = vsub.f32 1.0, %v2398
    %v2400 = vmul.f32 %v2397, %v2399
    %v2401 = vadd.f32 %v2397, %v2400
    %vm2402 = vweird.f32 %v1490
    %vm2403 = vweird.f32 %v2397
    %vm2404 = vmor %vm2402, %vm2403
    %v2405 = vsel %vm2404, %v2397, %v2401
    %v2406 = vand.u32 2147483647, %v1490
    %vm2407 = vcmp.eq.f32.partialorder %v2406, 8.507059e+37
    %v2408 = vand.u32 %v1490, 2147483648
    %v2409 = vor.u32 1.1754944e-38, %v2408
    %v2410 = vsel %vm2407, %v2409, %v2405
    %v2411 = vmul.f32 %v1362, %v2410
    %v2412 = vrcp.pop %v1492
    %v2413 = vmul.f32 %v1492, %v2412
    %v2414 = vsub.f32 1.0, %v2413
    %v2415 = vmul.f32 %v2412, %v2414
    %v2416 = vadd.f32 %v2412, %v2415
    %vm2417 = vweird.f32 %v1492
    %vm2418 = vweird.f32 %v2412
    %vm2419 = vmor %vm2417, %vm2418
    %v2420 = vsel %vm2419, %v2412, %v2416
    %v2421 = vand.u32 2147483647, %v1492
    %vm2422 = vcmp.eq.f32.partialorder %v2421, 8.507059e+37
    %v2423 = vand.u32 %v1492, 2147483648
    %v2424 = vor.u32 1.1754944e-38, %v2423
    %v2425 = vsel %vm2422, %v2424, %v2420
    %v2426 = vmul.f32 %v1364, %v2425
    %v2427 = vrcp.pop %v1494
    %v2428 = vmul.f32 %v1494, %v2427
    %v2429 = vsub.f32 1.0, %v2428
    %v2430 = vmul.f32 %v2427, %v2429
    %v2431 = vadd.f32 %v2427, %v2430
    %vm2432 = vweird.f32 %v1494
    %vm2433 = vweird.f32 %v2427
    %vm2434 = vmor %vm2432, %vm2433
    %v2435 = vsel %vm2434, %v2427, %v2431
    %v2436 = vand.u32 2147483647, %v1494
    %vm2437 = vcmp.eq.f32.partialorder %v2436, 8.507059e+37
    %v2438 = vand.u32 %v1494, 2147483648
    %v2439 = vor.u32 1.1754944e-38, %v2438
    %v2440 = vsel %vm2437, %v2439, %v2435
    %v2441 = vmul.f32 %v1366, %v2440
    %v2442 = vrcp.pop %v1496
    %v2443 = vmul.f32 %v1496, %v2442
    %v2444 = vsub.f32 1.0, %v2443
    %v2445 = vmul.f32 %v2442, %v2444
    %v2446 = vadd.f32 %v2442, %v2445
    %vm2447 = vweird.f32 %v1496
    %vm2448 = vweird.f32 %v2442
    %vm2449 = vmor %vm2447, %vm2448
    %v2450 = vsel %vm2449, %v2442, %v2446
    %v2451 = vand.u32 2147483647, %v1496
    %vm2452 = vcmp.eq.f32.partialorder %v2451, 8.507059e+37
    %v2453 = vand.u32 %v1496, 2147483648
    %v2454 = vor.u32 1.1754944e-38, %v2453
    %v2455 = vsel %vm2452, %v2454, %v2450
    %v2456 = vmul.f32 %v1368, %v2455
    %2457 = vst [vmem:[#allocation2] sm:$0xff] %v1511
    %2458 = vst [vmem:[#allocation2 + $0x8] sm:$0xff] %v1526
    %2459 = vst [vmem:[#allocation2 + $0x10] sm:$0xff] %v1541
    %2460 = vst [vmem:[#allocation2 + $0x18] sm:$0xff] %v1556
    %2461 = vst [vmem:[#allocation2 + $0x20] sm:$0xff] %v1571
    %2462 = vst [vmem:[#allocation2 + $0x28] sm:$0xff] %v1586
    %2463 = vst [vmem:[#allocation2 + $0x30] sm:$0xff] %v1601
    %2464 = vst [vmem:[#allocation2 + $0x38] sm:$0xff] %v1616
    %2465 = vst [vmem:[#allocation2 + $0x40] sm:$0xff] %v1631
    %2466 = vst [vmem:[#allocation2 + $0x48] sm:$0xff] %v1646
    %2467 = vst [vmem:[#allocation2 + $0x50] sm:$0xff] %v1661
    %2468 = vst [vmem:[#allocation2 + $0x58] sm:$0xff] %v1676
    %2469 = vst [vmem:[#allocation2 + $0x60] sm:$0xff] %v1691
    %2470 = vst [vmem:[#allocation2 + $0x68] sm:$0xff] %v1706
    %2471 = vst [vmem:[#allocation2 + $0x70] sm:$0xff] %v1721
    %2472 = vst [vmem:[#allocation2 + $0x78] sm:$0xff] %v1736
    %2473 = vst [vmem:[#allocation2 + $0x80] sm:$0xff] %v1751
    %2474 = vst [vmem:[#allocation2 + $0x88] sm:$0xff] %v1766
    %2475 = vst [vmem:[#allocation2 + $0x90] sm:$0xff] %v1781
    %2476 = vst [vmem:[#allocation2 + $0x98] sm:$0xff] %v1796
    %2477 = vst [vmem:[#allocation2 + $0xa0] sm:$0xff] %v1811
    %2478 = vst [vmem:[#allocation2 + $0xa8] sm:$0xff] %v1826
    %2479 = vst [vmem:[#allocation2 + $0xb0] sm:$0xff] %v1841
    %2480 = vst [vmem:[#allocation2 + $0xb8] sm:$0xff] %v1856
    %2481 = vst [vmem:[#allocation2 + $0xc0] sm:$0xff] %v1871
    %2482 = vst [vmem:[#allocation2 + $0xc8] sm:$0xff] %v1886
    %2483 = vst [vmem:[#allocation2 + $0xd0] sm:$0xff] %v1901
    %2484 = vst [vmem:[#allocation2 + $0xd8] sm:$0xff] %v1916
    %2485 = vst [vmem:[#allocation2 + $0xe0] sm:$0xff] %v1931
    %2486 = vst [vmem:[#allocation2 + $0xe8] sm:$0xff] %v1946
    %2487 = vst [vmem:[#allocation2 + $0xf0] sm:$0xff] %v1961
    %2488 = vst [vmem:[#allocation2 + $0xf8] sm:$0xff] %v1976
    %2489 = vst [vmem:[#allocation2 + $0x100] sm:$0xff] %v1991
    %2490 = vst [vmem:[#allocation2 + $0x108] sm:$0xff] %v2006
    %2491 = vst [vmem:[#allocation2 + $0x110] sm:$0xff] %v2021
    %2492 = vst [vmem:[#allocation2 + $0x118] sm:$0xff] %v2036
    %2493 = vst [vmem:[#allocation2 + $0x120] sm:$0xff] %v2051
    %2494 = vst [vmem:[#allocation2 + $0x128] sm:$0xff] %v2066
    %2495 = vst [vmem:[#allocation2 + $0x130] sm:$0xff] %v2081
    %2496 = vst [vmem:[#allocation2 + $0x138] sm:$0xff] %v2096
    %2497 = vst [vmem:[#allocation2 + $0x140] sm:$0xff] %v2111
    %2498 = vst [vmem:[#allocation2 + $0x148] sm:$0xff] %v2126
    %2499 = vst [vmem:[#allocation2 + $0x150] sm:$0xff] %v2141
    %2500 = vst [vmem:[#allocation2 + $0x158] sm:$0xff] %v2156
    %2501 = vst [vmem:[#allocation2 + $0x160] sm:$0xff] %v2171
    %2502 = vst [vmem:[#allocation2 + $0x168] sm:$0xff] %v2186
    %2503 = vst [vmem:[#allocation2 + $0x170] sm:$0xff] %v2201
    %2504 = vst [vmem:[#allocation2 + $0x178] sm:$0xff] %v2216
    %2505 = vst [vmem:[#allocation2 + $0x180] sm:$0xff] %v2231
    %2506 = vst [vmem:[#allocation2 + $0x188] sm:$0xff] %v2246
    %2507 = vst [vmem:[#allocation2 + $0x190] sm:$0xff] %v2261
    %2508 = vst [vmem:[#allocation2 + $0x198] sm:$0xff] %v2276
    %2509 = vst [vmem:[#allocation2 + $0x1a0] sm:$0xff] %v2291
    %2510 = vst [vmem:[#allocation2 + $0x1a8] sm:$0xff] %v2306
    %2511 = vst [vmem:[#allocation2 + $0x1b0] sm:$0xff] %v2321
    %2512 = vst [vmem:[#allocation2 + $0x1b8] sm:$0xff] %v2336
    %2513 = vst [vmem:[#allocation2 + $0x1c0] sm:$0xff] %v2351
    %2514 = vst [vmem:[#allocation2 + $0x1c8] sm:$0xff] %v2366
    %2515 = vst [vmem:[#allocation2 + $0x1d0] sm:$0xff] %v2381
    %2516 = vst [vmem:[#allocation2 + $0x1d8] sm:$0xff] %v2396
    %2517 = vst [vmem:[#allocation2 + $0x1e0] sm:$0xff] %v2411
    %2518 = vst [vmem:[#allocation2 + $0x1e8] sm:$0xff] %v2426
    %2519 = vst [vmem:[#allocation2 + $0x1f0] sm:$0xff] %v2441
    %2520 = vst [vmem:[#allocation2 + $0x1f8] sm:$0xff] %v2456
    // Predicated region
    $region22: #{tpu_custom_call.1} parent=1 // pred_check
      _
    $region23: #{tpu_custom_call.1} parent=1 // pred_check_branch
      %2522 = sbr.rel (0) target = $region25
    $region24: #{tpu_custom_call.1} parent=1 // pred_region
      %2524 = vsyncadd [#allocation3], 0
      %s2525 = sshll.u32 [#allocation2], 4
      %s2526 = int_to_ptr.vmem [resolvable:$true] %s2525
      %s2527 = sshll.u32 %s5, 4
      %s2528 = int_to_ptr.hbm [resolvable:$true] %s2527
      %2533 = dma.vmem_to_hbm [thread:$0]  %s2526, 8192, %s2528, [#allocation3], 128, 128, 8
    $region25: #{tpu_custom_call.1} parent=1 // pred_fallthru
      _
    // Predicated region
    $region26: #{tpu_custom_call.1} parent=1 // pred_check
      _
    $region27: #{tpu_custom_call.1} parent=1 // pred_check_branch
      %2535 = sbr.rel (0) target = $region29
    $region28: #{tpu_custom_call.1} parent=1 // pred_region
      %2537 = dma.done [#allocation3], 8192
    $region29: #{tpu_custom_call.1} parent=1 // pred_fallthru
      _
    %2538 = vsyncpa [#allocation3], 1

</llo_original>
